<compile_context>
chip_gen: v6e
topology: v6e:2x2x1
jax: 0.10.0
libtpu: 0.0.40
codegen_flags: <defaults>
</compile_context>

<pallas_src>
import functools

import jax
import jax.numpy as jnp
from jax.experimental import pallas as pl
from jax.experimental.pallas import tpu as pltpu

LANE = 128


def _round_up(v, m):
    return (v + m - 1) // m * m


def _pick_tiles(n):
    # 256-aligned tiles fill the v6e/v7x MXU output tile; 128 matches the v5e
    # MXU geometry and is the smallest lane-legal tile for small graphs.
    t = 256 if n >= 512 else 128
    return t, t


def _layer_vmem_limit(tm, tk, fin, fout, out_bytes):
    """Scoped-VMEM budget for one layer call: double-buffered blocks + acc."""
    blk = (tm * tk * 2 +            # Â tile (bf16)
           tk * fin * 2 +           # X tile (bf16)
           fin * fout * 2 +         # W (bf16, grid-invariant, resident)
           fout * 4 +               # bias (f32)
           tm * fout * out_bytes)   # output tile
    need = 2 * blk + tm * fin * 4 + (1 << 20)   # 2x buffering + f32 acc + slack
    return int(min(max(need, 4 << 20), 64 << 20))


# ----------------------------- Pallas kernel ------------------------------ #

def gcn_layer_kernel(a_ref, x_ref, w_ref, b_ref, o_ref, acc_ref):
    """One GCN layer tile: out = ReLU((Â @ X) @ W + b), reduction over k.

    a_ref  : (1, TM, TK)  bf16   row/col tile of the normalized adjacency
    x_ref  : (1, TK, Fin) bf16   node-feature tile (column block of Â's input)
    w_ref  : (Fin, Fout)  bf16   weight (grid-invariant)
    b_ref  : (1, Fout)    f32    bias  (grid-invariant)
    o_ref  : (1, TM, Fout)       output tile (resident across k)
    acc_ref: (TM, Fin)    f32    VMEM accumulator for Â @ X
    """
    k = pl.program_id(2)

    @pl.when(k == 0)
    def _():
        acc_ref[...] = jnp.zeros_like(acc_ref)

    # Propagation: accumulate the Â-row-tile @ X-column-tile partial product.
    acc_ref[...] += jnp.dot(a_ref[0], x_ref[0],
                            preferred_element_type=jnp.float32)

    @pl.when(k == pl.num_programs(2) - 1)
    def _():
        # Weight matmul + bias + ReLU only once per output tile.
        h = jnp.dot(acc_ref[...].astype(jnp.bfloat16), w_ref[...],
                    preferred_element_type=jnp.float32)
        h = jnp.maximum(h + b_ref[...], 0.0)          # f32 VPU path (v5e-safe)
        o_ref[0] = h.astype(o_ref.dtype)


def _gcn_layer(a_bf, x_in, w_bf, b_f32, *, tm, tk, out_dtype):
    """Run one GCN layer over all V views with a (V, rows, cols) grid."""
    V, NP, _ = a_bf.shape
    fin = x_in.shape[-1]
    fout = w_bf.shape[-1]
    out_bytes = jnp.dtype(out_dtype).itemsize

    grid = (V, NP // tm, NP // tk)
    return pl.pallas_call(
        gcn_layer_kernel,
        out_shape=jax.ShapeDtypeStruct((V, NP, fout), out_dtype),
        grid_spec=pltpu.PrefetchScalarGridSpec(
            num_scalar_prefetch=0,
            grid=grid,
            in_specs=[
                pl.BlockSpec((1, tm, tk), lambda v, i, k: (v, i, k)),
                pl.BlockSpec((1, tk, fin), lambda v, i, k: (v, k, 0)),
                pl.BlockSpec((fin, fout), lambda v, i, k: (0, 0)),
                pl.BlockSpec((1, fout), lambda v, i, k: (0, 0)),
            ],
            out_specs=pl.BlockSpec((1, tm, fout), lambda v, i, k: (v, i, 0)),
            scratch_shapes=[pltpu.VMEM((tm, fin), jnp.float32)],
        ),
        compiler_params=pltpu.CompilerParams(
            dimension_semantics=("parallel", "parallel", "arbitrary"),
            vmem_limit_bytes=_layer_vmem_limit(tm, tk, fin, fout, out_bytes),
        ),
    )(a_bf, x_in, w_bf, b_f32)


def run_gcn_encoder(a_views, x_views, w1, b1, w2, b2):
    """2-layer GCN node embeddings for all V=3 views; returns (V, N, H) f32."""
    V, N, _ = a_views.shape
    H = w1.shape[-1]
    HP = _round_up(H, LANE)                 # lane-dense hidden dim
    tm, tk = _pick_tiles(N)
    NP = _round_up(N, max(tm, tk))          # node dim padded to the tile

    # Zero-pad (padded Â rows/cols are 0, padded W/b columns are 0, and
    # ReLU preserves zeros, so padding never leaks into real rows/columns);
    # cast MXU operands to bf16, keep biases/activations f32.
    a_bf = jnp.pad(a_views, ((0, 0), (0, NP - N), (0, NP - N))).astype(jnp.bfloat16)
    x_bf = jnp.pad(x_views, ((0, 0), (0, NP - N), (0, 0))).astype(jnp.bfloat16)
    w1p = jnp.pad(w1, ((0, 0), (0, HP - H))).astype(jnp.bfloat16)
    w2p = jnp.pad(w2, ((0, HP - H), (0, HP - H))).astype(jnp.bfloat16)
    b1p = jnp.pad(b1, ((0, 0), (0, HP - H))).astype(jnp.float32)
    b2p = jnp.pad(b2, ((0, 0), (0, HP - H))).astype(jnp.float32)

    # Layer 1: ReLU((Â·X)·W1 + b1)  — intermediate emitted in bf16 (only ever
    # re-consumed as a bf16 MXU operand by layer 2).
    h1 = _gcn_layer(a_bf, x_bf, w1p, b1p, tm=tm, tk=tk, out_dtype=jnp.bfloat16)
    # Layer 2: ReLU((Â·H1)·W2 + b2) — final z in f32 (reference dtype).
    z_p = _gcn_layer(a_bf, h1, w2p, b2p, tm=tm, tk=tk, out_dtype=jnp.float32)

    return z_p[:, :N, :H]


# ------------------------------- JAX glue --------------------------------- #

def build_gcn_adjacencies(edge_index, edge_weight_views, num_nodes):
    """Â_v = D^{-1/2}(A_v + I)D^{-1/2} for all V views, via scatter-add.

    Degrees come directly from the edge weights (+1 for the self loop), so no
    dense-matrix row-sum is needed.
    """
    # TODO(synk): for large/sparse graphs, skip the dense Â entirely and do the
    # propagation as a gather/segment-sum, which also removes the O(N^2) tiles.
    src, dst = edge_index[0], edge_index[1]
    V = edge_weight_views.shape[0]
    a = jnp.zeros((V, num_nodes, num_nodes), jnp.float32)
    a = a.at[:, dst, src].add(edge_weight_views)                  # A[dst, src] += w
    a = a + jnp.eye(num_nodes, dtype=jnp.float32)[None]           # self loops
    deg = jnp.zeros((V, num_nodes), jnp.float32).at[:, dst].add(edge_weight_views) + 1.0
    dinv = jnp.where(deg > 0, jax.lax.rsqrt(deg), 0.0)
    return a * dinv[:, :, None] * dinv[:, None, :]


def feature_masking_aug(key, x, edge_index, pf=0.25):
    """Zero a deterministic subset of feature columns (edges intact)."""
    keep = (jax.random.uniform(key, (x.shape[1],)) >= pf).astype(x.dtype)
    x_aug = x * keep[None, :]
    edge_weight = jnp.ones((edge_index.shape[1],), jnp.float32)
    return x_aug, edge_index, edge_weight


def edge_removing_aug(key, x, edge_index, pe=0.25):
    """Drop a deterministic subset of edges (encoded as 0/1 edge weights)."""
    keep = (jax.random.uniform(key, (edge_index.shape[1],)) >= pe)
    return x, edge_index, keep.astype(jnp.float32)


@functools.partial(jax.jit, static_argnames=("num_graphs",))
def graphcl_encoder_forward(params, x, edge_index, batch, num_graphs, aug_keys):
    w1, b1, w2, b2 = params
    N = x.shape[0]
    E = edge_index.shape[1]

    # augmentations (same edge_index for every view; removal via 0-weights)
    x1, _ei1, ew1 = feature_masking_aug(aug_keys[0], x, edge_index)
    x2, _ei2, ew2 = edge_removing_aug(aug_keys[1], x, edge_index)
    ew0 = jnp.ones((E,), jnp.float32)

    ew_views = jnp.stack([ew0, ew1, ew2], axis=0)                 # (3, E)
    a_views = build_gcn_adjacencies(edge_index, ew_views, N)      # (3, N, N)
    x_views = jnp.stack([x, x1, x2], axis=0)                      # (3, N, F)

    z_views = run_gcn_encoder(a_views, x_views, w1, b1, w2, b2)   # (3, N, H) f32

    # global_add_pool(z, batch) per view — wrapper-side segment sum (G small).
    g_views = jax.vmap(
        lambda zv: jax.ops.segment_sum(zv, batch, num_segments=num_graphs)
    )(z_views)                                                    # (3, G, H)

    z, z1, z2 = z_views[0], z_views[1], z_views[2]
    g, g1, g2 = g_views[0], g_views[1], g_views[2]
    return z, g, z1, z2, g1, g2


# --------------------------------- main ------------------------------------ #

if __name__ == "__main__":
    key = jax.random.PRNGKey(0)
    k_x, k_w1, k_w2, k_aug1, k_aug2 = jax.random.split(key, 5)

    N = 16      # nodes total (2 graphs x 8 nodes)
    F = 8       # input node-feature dim
    H = 32      # hidden / embedding dim
    G = 2       # number of graphs in the batch

    # node features
    x = jax.random.normal(k_x, (N, F), jnp.float32)

    # two ring graphs of 8 nodes each, edge_index [2, E]
    def ring_edges(offset, n):
        src = jnp.arange(n) + offset
        dst = (jnp.arange(n) + 1) % n + offset
        return jnp.stack([jnp.concatenate([src, dst]),
                          jnp.concatenate([dst, src])], axis=0)

    edge_index = jnp.concatenate([ring_edges(0, 8), ring_edges(8, 8)], axis=1)
    edge_index = edge_index.astype(jnp.int32)
    batch = jnp.concatenate([jnp.zeros(8, jnp.int32), jnp.ones(8, jnp.int32)])

    # deterministic encoder parameters (2-layer GCN)
    w1 = jax.random.normal(k_w1, (F, H), jnp.float32) * 0.1
    b1 = jnp.zeros((1, H), jnp.float32)
    w2 = jax.random.normal(k_w2, (H, H), jnp.float32) * 0.1
    b2 = jnp.zeros((1, H), jnp.float32)
    params = (w1, b1, w2, b2)

    out = graphcl_encoder_forward(params, x, edge_index, batch, G,
                                  (k_aug1, k_aug2))
    out = jax.block_until_ready(out)

    z, g, z1, z2, g1, g2 = out
    assert z.shape == (N, H) and z1.shape == (N, H) and z2.shape == (N, H)
    assert g.shape == (G, H) and g1.shape == (G, H) and g2.shape == (G, H)
    assert all(bool(jnp.all(jnp.isfinite(o))) for o in out)

    print("KERNEL_OK")
</pallas_src>

<mosaic_0001>
module attributes {stable_mosaic.version = 11 : i64} {
  func.func @gcn_layer_kernel(%arg0: i32, %arg1: i32, %arg2: i32, %arg3: memref<1x128x128xbf16, #tpu.memory_space<vmem>>, %arg4: memref<1x128x8xbf16, #tpu.memory_space<vmem>>, %arg5: memref<8x128xbf16, #tpu.memory_space<vmem>>, %arg6: memref<1x128xf32, #tpu.memory_space<vmem>>, %arg7: memref<1x128x128xbf16, #tpu.memory_space<vmem>>, %arg8: memref<128x8xf32, #tpu.memory_space<vmem>>) attributes {dimension_semantics = [#tpu.dimension_semantics<parallel>, #tpu.dimension_semantics<parallel>, #tpu.dimension_semantics<arbitrary>], iteration_bounds = array<i64: 3, 1, 1>, scalar_prefetch = 0 : i64, scratch_operands = 1 : i64, tpu.core_type = #tpu.core_type<tc>, window_params = [{transform_indices = @transform_0, window_bounds = array<i64: 1, 128, 128>}, {transform_indices = @transform_1, window_bounds = array<i64: 1, 128, 8>}, {pipeline_mode = #tpu.pipeline_mode<synchronous>, transform_indices = @transform_2, window_bounds = array<i64: 8, 128>}, {pipeline_mode = #tpu.pipeline_mode<synchronous>, transform_indices = @transform_3, window_bounds = array<i64: 1, 128>}, {transform_indices = @transform_4, window_bounds = array<i64: 1, 128, 128>}]} {
    %c0_i32 = arith.constant 0 : i32
    %0 = arith.cmpi eq, %arg2, %c0_i32 : i32
    %1 = arith.extui %0 : i1 to i32
    %c0_i32_0 = arith.constant 0 : i32
    %2 = arith.cmpi ne, %1, %c0_i32_0 : i32
    scf.if %2 {
      %cst_12 = arith.constant 0.000000e+00 : f32
      %14 = vector.broadcast %cst_12 : f32 to vector<128x8xf32>
      %c0_13 = arith.constant 0 : index
      %c0_14 = arith.constant 0 : index
      %15 = vector.load %arg8[%c0_13, %c0_14] : memref<128x8xf32, #tpu.memory_space<vmem>>, vector<128x8xf32>
      tpu.vector_store %arg8[%c0_13, %c0_14], %14 {strides = array<i32>} : memref<128x8xf32, #tpu.memory_space<vmem>>, vector<128x8xf32>,
    } else {
    }
    %c0 = arith.constant 0 : index
    %c0_1 = arith.constant 0 : index
    %3 = vector.load %arg8[%c0, %c0_1] : memref<128x8xf32, #tpu.memory_space<vmem>>, vector<128x8xf32>
    %c0_2 = arith.constant 0 : index
    %c0_3 = arith.constant 0 : index
    %c0_4 = arith.constant 0 : index
    %4 = vector.load %arg3[%c0_2, %c0_3, %c0_4] : memref<1x128x128xbf16, #tpu.memory_space<vmem>>, vector<1x128x128xbf16>
    %5 = vector.shape_cast %4 : vector<1x128x128xbf16> to vector<128x128xbf16>
    %c0_5 = arith.constant 0 : index
    %c0_6 = arith.constant 0 : index
    %c0_7 = arith.constant 0 : index
    %6 = vector.load %arg4[%c0_5, %c0_6, %c0_7] : memref<1x128x8xbf16, #tpu.memory_space<vmem>>, vector<1x128x8xbf16>
    %7 = vector.shape_cast %6 : vector<1x128x8xbf16> to vector<128x8xbf16>
    %cst = arith.constant dense<0.000000e+00> : vector<128x8xf32>
    %8 = tpu.matmul %5, %7, %cst {dimension_numbers = #tpu.dot_dimension_numbers<[1], [0], [0], [1], [0, 0, 1, 1], [], []>} : vector<128x128xbf16>, vector<128x8xbf16>, vector<128x8xf32> -> vector<128x8xf32>
    %9 = arith.addf %3, %8 : vector<128x8xf32>
    %c0_8 = arith.constant 0 : index
    %c0_9 = arith.constant 0 : index
    %10 = vector.load %arg8[%c0_8, %c0_9] : memref<128x8xf32, #tpu.memory_space<vmem>>, vector<128x8xf32>
    tpu.vector_store %arg8[%c0_8, %c0_9], %9 {strides = array<i32>} : memref<128x8xf32, #tpu.memory_space<vmem>>, vector<128x8xf32>,
    %c0_i32_10 = arith.constant 0 : i32
    %11 = arith.cmpi eq, %arg2, %c0_i32_10 : i32
    %12 = arith.extui %11 : i1 to i32
    %c0_i32_11 = arith.constant 0 : i32
    %13 = arith.cmpi ne, %12, %c0_i32_11 : i32
    scf.if %13 {
      %c0_12 = arith.constant 0 : index
      %c0_13 = arith.constant 0 : index
      %14 = vector.load %arg8[%c0_12, %c0_13] : memref<128x8xf32, #tpu.memory_space<vmem>>, vector<128x8xf32>
      %15 = arith.truncf %14 : vector<128x8xf32> to vector<128x8xbf16>
      %c0_14 = arith.constant 0 : index
      %c0_15 = arith.constant 0 : index
      %16 = vector.load %arg5[%c0_14, %c0_15] : memref<8x128xbf16, #tpu.memory_space<vmem>>, vector<8x128xbf16>
      %cst_16 = arith.constant dense<0.000000e+00> : vector<128x128xf32>
      %17 = tpu.matmul %15, %16, %cst_16 {dimension_numbers = #tpu.dot_dimension_numbers<[1], [0], [0], [1], [0, 0, 1, 1], [], []>} : vector<128x8xbf16>, vector<8x128xbf16>, vector<128x128xf32> -> vector<128x128xf32>
      %c0_17 = arith.constant 0 : index
      %c0_18 = arith.constant 0 : index
      %18 = vector.load %arg6[%c0_17, %c0_18] : memref<1x128xf32, #tpu.memory_space<vmem>>, vector<1x128xf32>
      %19 = vector.broadcast %18 : vector<1x128xf32> to vector<128x128xf32>
      %20 = arith.addf %17, %19 : vector<128x128xf32>
      %cst_19 = arith.constant 0.000000e+00 : f32
      %21 = vector.broadcast %cst_19 : f32 to vector<128x128xf32>
      %22 = arith.maximumf %20, %21 : vector<128x128xf32>
      %23 = arith.truncf %22 : vector<128x128xf32> to vector<128x128xbf16>
      %c0_20 = arith.constant 0 : index
      %c0_21 = arith.constant 0 : index
      %c0_22 = arith.constant 0 : index
      %24 = vector.load %arg7[%c0_20, %c0_21, %c0_22] : memref<1x128x128xbf16, #tpu.memory_space<vmem>>, vector<1x128x128xbf16>
      %25 = vector.shape_cast %24 : vector<1x128x128xbf16> to vector<128x128xbf16>
      %26 = vector.shape_cast %23 : vector<128x128xbf16> to vector<1x128x128xbf16>
      tpu.vector_store %arg7[%c0_20, %c0_21, %c0_22], %26 {strides = array<i32>} : memref<1x128x128xbf16, #tpu.memory_space<vmem>>, vector<1x128x128xbf16>,
    } else {
    }
    return
  }
  func.func @transform_0(%arg0: i32, %arg1: i32, %arg2: i32) -> (i32, i32, i32) {
    %c0_i32 = arith.constant 0 : i32
    return %arg0, %arg1, %arg2 : i32, i32, i32
  }
  func.func @transform_1(%arg0: i32, %arg1: i32, %arg2: i32) -> (i32, i32, i32) {
    %c0_i32 = arith.constant 0 : i32
    %c0_i32_0 = arith.constant 0 : i32
    return %arg0, %arg2, %c0_i32 : i32, i32, i32
  }
  func.func @transform_2(%arg0: i32, %arg1: i32, %arg2: i32) -> (i32, i32) {
    %c0_i32 = arith.constant 0 : i32
    %c0_i32_0 = arith.constant 0 : i32
    %c0_i32_1 = arith.constant 0 : i32
    return %c0_i32, %c0_i32_0 : i32, i32
  }
  func.func @transform_3(%arg0: i32, %arg1: i32, %arg2: i32) -> (i32, i32) {
    %c0_i32 = arith.constant 0 : i32
    %c0_i32_0 = arith.constant 0 : i32
    %c0_i32_1 = arith.constant 0 : i32
    return %c0_i32, %c0_i32_0 : i32, i32
  }
  func.func @transform_4(%arg0: i32, %arg1: i32, %arg2: i32) -> (i32, i32, i32) {
    %c0_i32 = arith.constant 0 : i32
    %c0_i32_0 = arith.constant 0 : i32
    return %arg0, %arg1, %c0_i32 : i32, i32, i32
  }
}

module attributes {stable_mosaic.version = 11 : i64} {
  func.func @gcn_layer_kernel(%arg0: i32, %arg1: i32, %arg2: i32, %arg3: memref<1x128x128xbf16, #tpu.memory_space<vmem>>, %arg4: memref<1x128x128xbf16, #tpu.memory_space<vmem>>, %arg5: memref<128x128xbf16, #tpu.memory_space<vmem>>, %arg6: memref<1x128xf32, #tpu.memory_space<vmem>>, %arg7: memref<1x128x128xf32, #tpu.memory_space<vmem>>, %arg8: memref<128x128xf32, #tpu.memory_space<vmem>>) attributes {dimension_semantics = [#tpu.dimension_semantics<parallel>, #tpu.dimension_semantics<parallel>, #tpu.dimension_semantics<arbitrary>], iteration_bounds = array<i64: 3, 1, 1>, scalar_prefetch = 0 : i64, scratch_operands = 1 : i64, tpu.core_type = #tpu.core_type<tc>, window_params = [{transform_indices = @transform_0, window_bounds = array<i64: 1, 128, 128>}, {transform_indices = @transform_1, window_bounds = array<i64: 1, 128, 128>}, {pipeline_mode = #tpu.pipeline_mode<synchronous>, transform_indices = @transform_2, window_bounds = array<i64: 128, 128>}, {pipeline_mode = #tpu.pipeline_mode<synchronous>, transform_indices = @transform_3, window_bounds = array<i64: 1, 128>}, {transform_indices = @transform_4, window_bounds = array<i64: 1, 128, 128>}]} {
    %c0_i32 = arith.constant 0 : i32
    %0 = arith.cmpi eq, %arg2, %c0_i32 : i32
    %1 = arith.extui %0 : i1 to i32
    %c0_i32_0 = arith.constant 0 : i32
    %2 = arith.cmpi ne, %1, %c0_i32_0 : i32
    scf.if %2 {
      %cst_12 = arith.constant 0.000000e+00 : f32
      %14 = vector.broadcast %cst_12 : f32 to vector<128x128xf32>
      %c0_13 = arith.constant 0 : index
      %c0_14 = arith.constant 0 : index
      %15 = vector.load %arg8[%c0_13, %c0_14] : memref<128x128xf32, #tpu.memory_space<vmem>>, vector<128x128xf32>
      tpu.vector_store %arg8[%c0_13, %c0_14], %14 {strides = array<i32>} : memref<128x128xf32, #tpu.memory_space<vmem>>, vector<128x128xf32>,
    } else {
    }
    %c0 = arith.constant 0 : index
    %c0_1 = arith.constant 0 : index
    %3 = vector.load %arg8[%c0, %c0_1] : memref<128x128xf32, #tpu.memory_space<vmem>>, vector<128x128xf32>
    %c0_2 = arith.constant 0 : index
    %c0_3 = arith.constant 0 : index
    %c0_4 = arith.constant 0 : index
    %4 = vector.load %arg3[%c0_2, %c0_3, %c0_4] : memref<1x128x128xbf16, #tpu.memory_space<vmem>>, vector<1x128x128xbf16>
    %5 = vector.shape_cast %4 : vector<1x128x128xbf16> to vector<128x128xbf16>
    %c0_5 = arith.constant 0 : index
    %c0_6 = arith.constant 0 : index
    %c0_7 = arith.constant 0 : index
    %6 = vector.load %arg4[%c0_5, %c0_6, %c0_7] : memref<1x128x128xbf16, #tpu.memory_space<vmem>>, vector<1x128x128xbf16>
    %7 = vector.shape_cast %6 : vector<1x128x128xbf16> to vector<128x128xbf16>
    %cst = arith.constant dense<0.000000e+00> : vector<128x128xf32>
    %8 = tpu.matmul %5, %7, %cst {dimension_numbers = #tpu.dot_dimension_numbers<[1], [0], [0], [1], [0, 0, 1, 1], [], []>} : vector<128x128xbf16>, vector<128x128xbf16>, vector<128x128xf32> -> vector<128x128xf32>
    %9 = arith.addf %3, %8 : vector<128x128xf32>
    %c0_8 = arith.constant 0 : index
    %c0_9 = arith.constant 0 : index
    %10 = vector.load %arg8[%c0_8, %c0_9] : memref<128x128xf32, #tpu.memory_space<vmem>>, vector<128x128xf32>
    tpu.vector_store %arg8[%c0_8, %c0_9], %9 {strides = array<i32>} : memref<128x128xf32, #tpu.memory_space<vmem>>, vector<128x128xf32>,
    %c0_i32_10 = arith.constant 0 : i32
    %11 = arith.cmpi eq, %arg2, %c0_i32_10 : i32
    %12 = arith.extui %11 : i1 to i32
    %c0_i32_11 = arith.constant 0 : i32
    %13 = arith.cmpi ne, %12, %c0_i32_11 : i32
    scf.if %13 {
      %c0_12 = arith.constant 0 : index
      %c0_13 = arith.constant 0 : index
      %14 = vector.load %arg8[%c0_12, %c0_13] : memref<128x128xf32, #tpu.memory_space<vmem>>, vector<128x128xf32>
      %15 = arith.truncf %14 : vector<128x128xf32> to vector<128x128xbf16>
      %c0_14 = arith.constant 0 : index
      %c0_15 = arith.constant 0 : index
      %16 = vector.load %arg5[%c0_14, %c0_15] : memref<128x128xbf16, #tpu.memory_space<vmem>>, vector<128x128xbf16>
      %cst_16 = arith.constant dense<0.000000e+00> : vector<128x128xf32>
      %17 = tpu.matmul %15, %16, %cst_16 {dimension_numbers = #tpu.dot_dimension_numbers<[1], [0], [0], [1], [0, 0, 1, 1], [], []>} : vector<128x128xbf16>, vector<128x128xbf16>, vector<128x128xf32> -> vector<128x128xf32>
      %c0_17 = arith.constant 0 : index
      %c0_18 = arith.constant 0 : index
      %18 = vector.load %arg6[%c0_17, %c0_18] : memref<1x128xf32, #tpu.memory_space<vmem>>, vector<1x128xf32>
      %19 = vector.broadcast %18 : vector<1x128xf32> to vector<128x128xf32>
      %20 = arith.addf %17, %19 : vector<128x128xf32>
      %cst_19 = arith.constant 0.000000e+00 : f32
      %21 = vector.broadcast %cst_19 : f32 to vector<128x128xf32>
      %22 = arith.maximumf %20, %21 : vector<128x128xf32>
      %c0_20 = arith.constant 0 : index
      %c0_21 = arith.constant 0 : index
      %c0_22 = arith.constant 0 : index
      %23 = vector.load %arg7[%c0_20, %c0_21, %c0_22] : memref<1x128x128xf32, #tpu.memory_space<vmem>>, vector<1x128x128xf32>
      %24 = vector.shape_cast %23 : vector<1x128x128xf32> to vector<128x128xf32>
      %25 = vector.shape_cast %22 : vector<128x128xf32> to vector<1x128x128xf32>
      tpu.vector_store %arg7[%c0_20, %c0_21, %c0_22], %25 {strides = array<i32>} : memref<1x128x128xf32, #tpu.memory_space<vmem>>, vector<1x128x128xf32>,
    } else {
    }
    return
  }
  func.func @transform_0(%arg0: i32, %arg1: i32, %arg2: i32) -> (i32, i32, i32) {
    %c0_i32 = arith.constant 0 : i32
    return %arg0, %arg1, %arg2 : i32, i32, i32
  }
  func.func @transform_1(%arg0: i32, %arg1: i32, %arg2: i32) -> (i32, i32, i32) {
    %c0_i32 = arith.constant 0 : i32
    %c0_i32_0 = arith.constant 0 : i32
    return %arg0, %arg2, %c0_i32 : i32, i32, i32
  }
  func.func @transform_2(%arg0: i32, %arg1: i32, %arg2: i32) -> (i32, i32) {
    %c0_i32 = arith.constant 0 : i32
    %c0_i32_0 = arith.constant 0 : i32
    %c0_i32_1 = arith.constant 0 : i32
    return %c0_i32, %c0_i32_0 : i32, i32
  }
  func.func @transform_3(%arg0: i32, %arg1: i32, %arg2: i32) -> (i32, i32) {
    %c0_i32 = arith.constant 0 : i32
    %c0_i32_0 = arith.constant 0 : i32
    %c0_i32_1 = arith.constant 0 : i32
    return %c0_i32, %c0_i32_0 : i32, i32
  }
  func.func @transform_4(%arg0: i32, %arg1: i32, %arg2: i32) -> (i32, i32, i32) {
    %c0_i32 = arith.constant 0 : i32
    %c0_i32_0 = arith.constant 0 : i32
    return %arg0, %arg1, %c0_i32 : i32, i32, i32
  }
}

</mosaic_0001>

<llo_original>
// kernel: graphcl_encoder_forward.3
$region0: #{graphcl_encoder_forward.3}
  #allocation0 [shape = 'u32[]', space=smem, size = 0x4, offset = 0x4, fixed_abs, tag = 'smem constant byte address 0x4 - core index']
  #allocation1 [shape = 'u32[144,128]{1,0:T(1,128)}', space=vmem, size = 0x12000, scoped, tag = 'internal scratch']
  #allocation2 [shape = 'f32[128,128]{1,0:T(8,128)}', space=vmem, size = 0x10000, scoped, tag = 'scratch operand']
  %s0 = inlined_call_operand.vmem [shape: bf16[3,128,128], index: 0, kind: input, shape index: {}]
  %s1 = inlined_call_operand.vmem [shape: bf16[3,128,128], index: 1, kind: input, shape index: {}]
  %s2 = inlined_call_operand.vmem [shape: bf16[128,128], index: 2, kind: input, shape index: {}]
  %s3 = inlined_call_operand.vmem [shape: f32[1,128], index: 3, kind: input, shape index: {}]
  %s4 = inlined_call_operand.vmem [shape: f32[3,128,128], index: 4, kind: output, shape index: {}]
  %s5 = sld [smem:[#allocation0]]
  $region57: #{graphcl_encoder_forward.3} parent=0
    _
  %s7 = ssub.s32 1, %s5
  %s8 = scalar_select 0, %s7, %s5
  loop: start=0, step=1, limit=5
  $region2: #{graphcl_encoder_forward.3} parent=0 // loop_pre_header
    _
  $region3: #{graphcl_encoder_forward.3} parent=0 // loop_header
    %s10 = sphi 0, %s14
    %p11 = scmp.ge.s32.totalorder %s10, 5
    %s17 = sphi 0, %s36
    %s18 = sphi 0, %s32
    %s19 = sphi 0, %s28
    %s20 = sphi 0, %s17
    %s21 = sphi 0, %s18
    %s22 = sphi 0, %s19
    %s23 = sphi 0, %s20
    %s24 = sphi 0, %s21
    %s25 = sphi 0, %s22
    %s43 = sphi 0, %s45
    %s46 = sphi 0, %s43
    %s47 = sphi 0, %s46
    %s63 = sphi 0, %s47
    %s71 = sphi 0, %s73
    %s74 = sphi 0, %s71
    %s75 = sphi 0, %s74
    %s91 = sphi 0, %s75
    %s95 = sphi 0, %s95
    %s97 = sphi 0, %s95
    %s98 = sphi 0, %s97
    %s112 = sphi 0, %s98
    %s116 = sphi 0, %s116
    %s118 = sphi 0, %s116
    %s119 = sphi 0, %s118
    %s133 = sphi 0, %s119
    %s141 = sphi 0, %s143
    %s144 = sphi 0, %s141
    %s145 = sphi 0, %s144
    %s161 = sphi 0, %s145
  $region4: #{graphcl_encoder_forward.3} parent=0 // loop_header_branch
    %13 = sbr.rel (%p11) target = $region8
  $region5: #{graphcl_encoder_forward.3} parent=0 // loop_body
    %s15 = ssub.s32 %s10, 1
    %s16 = ssub.s32 %s10, 2
    %s26 = sadd.s32 1, %s19
    %p27 = scmp.ge.s32.totalorder %s26, 1
    %s28 = scalar_select %p27, 0, %s26
    %s29 = sadd.s32 1, %s18
    %s30 = scalar_select %p27, %s29, %s18
    %p31 = scmp.ge.s32.totalorder %s30, 1
    %s32 = scalar_select %p31, 0, %s30
    %s33 = sadd.s32 1, %s17
    %s34 = scalar_select %p31, %s33, %s17
    %p35 = scmp.ge.s32.totalorder %s34, 3
    %s36 = scalar_select %p35, 0, %s34
    %s37 = ssub.s32 %s17, %s36
    %s38 = ssub.s32 %s18, %s32
    %s39 = sor.u32 %s37, %s38
    %s40 = ssub.s32 %s19, %s28
    %s41 = sor.u32 %s39, %s40
    %p42 = scmp.eq.s32.totalorder %s41, 0
    %s44 = sadd.s32 %s43, 1
    %s45 = scalar_select %p42, %s43, %s44
    %p48 = pneg %p42
    %p49 = scmp.eq.s32.totalorder %s10, 2
    %p50 = por %p48, %p49
    %p51 = scmp.ne.s32.totalorder %s43, %s46
    %p52 = scmp.eq.s32.totalorder %s10, 0
    %p53 = por %p51, %p52
    %p54 = scmp.ne.s32.totalorder %s43, %s46
    %p55 = scmp.eq.s32.totalorder %s15, 2
    %p56 = por %p54, %p55
    %p57 = scmp.ne.s32.totalorder %s46, %s47
    %p58 = scmp.eq.s32.totalorder %s15, 0
    %p59 = por %p57, %p58
    %p60 = scmp.ne.s32.totalorder %s46, %s47
    %p61 = scmp.eq.s32.totalorder %s16, 2
    %p62 = por %p60, %p61
    %p64 = scmp.ne.s32.totalorder %s47, %s63
    %p65 = scmp.eq.s32.totalorder %s16, 0
    %p66 = por %p64, %p65
    %s67 = ssub.s32 %s17, %s36
    %s68 = ssub.s32 %s19, %s28
    %s69 = sor.u32 %s67, %s68
    %p70 = scmp.eq.s32.totalorder %s69, 0
    %s72 = sadd.s32 %s71, 1
    %s73 = scalar_select %p70, %s71, %s72
    %p76 = pneg %p70
    %p77 = scmp.eq.s32.totalorder %s10, 2
    %p78 = por %p76, %p77
    %p79 = scmp.ne.s32.totalorder %s71, %s74
    %p80 = scmp.eq.s32.totalorder %s10, 0
    %p81 = por %p79, %p80
    %p82 = scmp.ne.s32.totalorder %s71, %s74
    %p83 = scmp.eq.s32.totalorder %s15, 2
    %p84 = por %p82, %p83
    %p85 = scmp.ne.s32.totalorder %s74, %s75
    %p86 = scmp.eq.s32.totalorder %s15, 0
    %p87 = por %p85, %p86
    %p88 = scmp.ne.s32.totalorder %s74, %s75
    %p89 = scmp.eq.s32.totalorder %s16, 2
    %p90 = por %p88, %p89
    %p92 = scmp.ne.s32.totalorder %s75, %s91
    %p93 = scmp.eq.s32.totalorder %s16, 0
    %p94 = por %p92, %p93
    %s96 = sadd.s32 %s95, 1
    %p99 = scmp.eq.s32.totalorder %s10, 2
    %p100 = scmp.ne.s32.totalorder %s95, %s97
    %p101 = scmp.eq.s32.totalorder %s10, 0
    %p102 = por %p100, %p101
    %p103 = scmp.ne.s32.totalorder %s95, %s97
    %p104 = scmp.eq.s32.totalorder %s15, 2
    %p105 = por %p103, %p104
    %p106 = scmp.ne.s32.totalorder %s97, %s98
    %p107 = scmp.eq.s32.totalorder %s15, 0
    %p108 = por %p106, %p107
    %p109 = scmp.ne.s32.totalorder %s97, %s98
    %p110 = scmp.eq.s32.totalorder %s16, 2
    %p111 = por %p109, %p110
    %p113 = scmp.ne.s32.totalorder %s98, %s112
    %p114 = scmp.eq.s32.totalorder %s16, 0
    %p115 = por %p113, %p114
    %s117 = sadd.s32 %s116, 1
    %p120 = scmp.eq.s32.totalorder %s10, 2
    %p121 = scmp.ne.s32.totalorder %s116, %s118
    %p122 = scmp.eq.s32.totalorder %s10, 0
    %p123 = por %p121, %p122
    %p124 = scmp.ne.s32.totalorder %s116, %s118
    %p125 = scmp.eq.s32.totalorder %s15, 2
    %p126 = por %p124, %p125
    %p127 = scmp.ne.s32.totalorder %s118, %s119
    %p128 = scmp.eq.s32.totalorder %s15, 0
    %p129 = por %p127, %p128
    %p130 = scmp.ne.s32.totalorder %s118, %s119
    %p131 = scmp.eq.s32.totalorder %s16, 2
    %p132 = por %p130, %p131
    %p134 = scmp.ne.s32.totalorder %s119, %s133
    %p135 = scmp.eq.s32.totalorder %s16, 0
    %p136 = por %p134, %p135
    %s137 = ssub.s32 %s17, %s36
    %s138 = ssub.s32 %s18, %s32
    %s139 = sor.u32 %s137, %s138
    %p140 = scmp.eq.s32.totalorder %s139, 0
    %s142 = sadd.s32 %s141, 1
    %s143 = scalar_select %p140, %s141, %s142
    %p146 = pneg %p140
    %p147 = scmp.eq.s32.totalorder %s10, 2
    %p148 = por %p146, %p147
    %p149 = scmp.ne.s32.totalorder %s141, %s144
    %p150 = scmp.eq.s32.totalorder %s10, 0
    %p151 = por %p149, %p150
    %p152 = scmp.ne.s32.totalorder %s141, %s144
    %p153 = scmp.eq.s32.totalorder %s15, 2
    %p154 = por %p152, %p153
    %p155 = scmp.ne.s32.totalorder %s144, %s145
    %p156 = scmp.eq.s32.totalorder %s15, 0
    %p157 = por %p155, %p156
    %p158 = scmp.ne.s32.totalorder %s144, %s145
    %p159 = scmp.eq.s32.totalorder %s16, 2
    %p160 = por %p158, %p159
    %p162 = scmp.ne.s32.totalorder %s145, %s161
    %p163 = scmp.eq.s32.totalorder %s16, 0
    %p164 = por %p162, %p163
    %p165 = scmp.le.s32.totalorder 1, %s10
    %p166 = scmp.lt.s32.totalorder %s10, 4
    %p167 = pnand %p165, %p166
    %p168 = pneg %p167
    // Predicated region
    $region9: #{graphcl_encoder_forward.3} parent=5 // pred_check
      _
    $region10: #{graphcl_encoder_forward.3} parent=5 // pred_check_branch
      %170 = sbr.rel (%p167) target = $region12
    $region11: #{graphcl_encoder_forward.3} parent=5 // pred_region
      %s171 = ssub.s32 %s10, 1
      // Predicated region
      $region13: #{graphcl_encoder_forward.3} parent=11 // pred_check
        %p172 = pneg %p108
      $region14: #{graphcl_encoder_forward.3} parent=11 // pred_check_branch
        %174 = sbr.rel (%p172) target = $region16
      $region15: #{graphcl_encoder_forward.3} parent=11 // pred_region
        _
      $region16: #{graphcl_encoder_forward.3} parent=11 // pred_fallthru
        _
      // Predicated region
      $region17: #{graphcl_encoder_forward.3} parent=11 // pred_check
        %p175 = pneg %p129
      $region18: #{graphcl_encoder_forward.3} parent=11 // pred_check_branch
        %177 = sbr.rel (%p175) target = $region20
      $region19: #{graphcl_encoder_forward.3} parent=11 // pred_region
        _
      $region20: #{graphcl_encoder_forward.3} parent=11 // pred_fallthru
        _
    $region12: #{graphcl_encoder_forward.3} parent=5 // pred_fallthru
      _
    %p178 = scmp.lt.s32.totalorder %s10, 3
    // Predicated region
    $region21: #{graphcl_encoder_forward.3} parent=5 // pred_check
      %p179 = pneg %p178
    $region22: #{graphcl_encoder_forward.3} parent=5 // pred_check_branch
      %181 = sbr.rel (%p179) target = $region24
    $region23: #{graphcl_encoder_forward.3} parent=5 // pred_region
      // Predicated region
      $region25: #{graphcl_encoder_forward.3} parent=23 // pred_check
        %p182 = pneg %p53
      $region26: #{graphcl_encoder_forward.3} parent=23 // pred_check_branch
        %184 = sbr.rel (%p182) target = $region28
      $region27: #{graphcl_encoder_forward.3} parent=23 // pred_region
        %s185 = smul.u32 16, %s18
        %p186 = scmp.lt.s32.totalorder %s17, 2
        %s187 = scalar_select %p186, %s17, 2
        %p188 = scmp.lt.s32.totalorder %s185, 15
        %s189 = scalar_select %p188, %s185, 15
        %p190 = scmp.lt.s32.totalorder %s19, 0
        %s191 = scalar_select %p190, %s19, 0
        %s192 = sadd.s32 %s191, %s189
        %s193 = smul.addr %s187, 16
        %s194 = sadd.s32 %s192, %s193
        %s195 = smul.addr %s194, 4
        %s196 = scalar_lea.vmem %s0, %s195
        %s197 = smul.u32 16, %s18
      $region28: #{graphcl_encoder_forward.3} parent=23 // pred_fallthru
        _
      // Predicated region
      $region29: #{graphcl_encoder_forward.3} parent=23 // pred_check
        %p198 = pneg %p81
      $region30: #{graphcl_encoder_forward.3} parent=23 // pred_check_branch
        %200 = sbr.rel (%p198) target = $region32
      $region31: #{graphcl_encoder_forward.3} parent=23 // pred_region
        %s201 = smul.u32 16, %s19
        %p202 = scmp.lt.s32.totalorder %s17, 2
        %s203 = scalar_select %p202, %s17, 2
        %p204 = scmp.lt.s32.totalorder %s201, 15
        %s205 = scalar_select %p204, %s201, 15
        %s206 = smul.addr %s203, 16
        %s207 = sadd.s32 %s205, %s206
        %s208 = smul.addr %s207, 4
        %s209 = scalar_lea.vmem %s1, %s208
        %s210 = smul.u32 16, %s19
      $region32: #{graphcl_encoder_forward.3} parent=23 // pred_fallthru
        _
    $region24: #{graphcl_encoder_forward.3} parent=5 // pred_fallthru
      _
    %p211 = scmp.le.s32.totalorder 1, %s10
    %p212 = scmp.lt.s32.totalorder %s10, 4
    %p213 = pnand %p211, %p212
    %p214 = pneg %p213
    // Predicated region
    $region33: #{graphcl_encoder_forward.3} parent=5 // pred_check
      _
    $region34: #{graphcl_encoder_forward.3} parent=5 // pred_check_branch
      %216 = sbr.rel (%p213) target = $region36
    $region35: #{graphcl_encoder_forward.3} parent=5 // pred_region
      %s217 = ssub.s32 %s10, 1
      %s218 = smul.u32 16, %s21
      %p219 = scmp.lt.s32.totalorder %s20, 2
      %s220 = scalar_select %p219, %s20, 2
      %p221 = scmp.lt.s32.totalorder %s218, 15
      %s222 = scalar_select %p221, %s218, 15
      %p223 = scmp.lt.s32.totalorder %s22, 0
      %s224 = scalar_select %p223, %s22, 0
      %s225 = sadd.s32 %s224, %s222
      %s226 = smul.addr %s220, 16
      %s227 = sadd.s32 %s225, %s226
      %s228 = smul.addr %s227, 4
      %s229 = scalar_lea.vmem %s0, %s228
      %p230 = pneg %p59
      %p231 = pneg %p56
      %s232 = smul.u32 16, %s22
      %p233 = scmp.lt.s32.totalorder %s20, 2
      %s234 = scalar_select %p233, %s20, 2
      %p235 = scmp.lt.s32.totalorder %s232, 15
      %s236 = scalar_select %p235, %s232, 15
      %s237 = smul.addr %s234, 16
      %s238 = sadd.s32 %s236, %s237
      %s239 = smul.addr %s238, 4
      %s240 = scalar_lea.vmem %s1, %s239
      %p241 = pneg %p87
      %p242 = pneg %p84
      %p243 = pneg %p108
      %p244 = pneg %p105
      %p245 = pneg %p129
      %p246 = pneg %p126
      %p247 = pneg %p157
      %p248 = pneg %p154
      %s249 = smul.u32 16, %s21
      %p250 = scmp.lt.s32.totalorder %s20, 2
      %s251 = scalar_select %p250, %s20, 2
      %p252 = scmp.lt.s32.totalorder %s249, 15
      %s253 = scalar_select %p252, %s249, 15
      %s254 = smul.addr %s251, 16
      %s255 = sadd.s32 %s253, %s254
      %s256 = smul.addr %s255, 8
      %s257 = scalar_lea.vmem %s4, %s256
      %s258 = smul.u32 16, %s21
      %p259 = scmp.lt.s32.totalorder %s20, 2
      %s260 = scalar_select %p259, %s20, 2
      %p261 = scmp.lt.s32.totalorder %s258, 15
      %s262 = scalar_select %p261, %s258, 15
      %p263 = scmp.lt.s32.totalorder %s22, 0
      %s264 = scalar_select %p263, %s22, 0
      %s265 = sadd.s32 %s264, %s262
      %s266 = smul.addr %s260, 16
      %s267 = sadd.s32 %s265, %s266
      %s268 = smul.addr %s267, 4
      %s269 = scalar_lea.vmem %s0, %s268
      %s270 = smul.u32 16, %s21
      %s271 = smul.u32 16, %s22
      %p272 = scmp.lt.s32.totalorder %s20, 2
      %s273 = scalar_select %p272, %s20, 2
      %p274 = scmp.lt.s32.totalorder %s271, 15
      %s275 = scalar_select %p274, %s271, 15
      %s276 = smul.addr %s273, 16
      %s277 = sadd.s32 %s275, %s276
      %s278 = smul.addr %s277, 4
      %s279 = scalar_lea.vmem %s1, %s278
      %s280 = smul.u32 16, %s22
      %s281 = smul.u32 16, %s21
      %p282 = scmp.lt.s32.totalorder %s20, 2
      %s283 = scalar_select %p282, %s20, 2
      %p284 = scmp.lt.s32.totalorder %s281, 15
      %s285 = scalar_select %p284, %s281, 15
      %s286 = smul.addr %s283, 16
      %s287 = sadd.s32 %s285, %s286
      %s288 = smul.addr %s287, 8
      %s289 = scalar_lea.vmem %s4, %s288
      %s290 = smul.u32 16, %s21
      %p292 = scmp.eq.s32.totalorder %s22, 0
      // Predicated region
      $region37: #{graphcl_encoder_forward.3} parent=35 // pred_check
        %p293 = pneg %p292
      $region38: #{graphcl_encoder_forward.3} parent=35 // pred_check_branch
        %295 = sbr.rel (%p293) target = $region40
      $region39: #{graphcl_encoder_forward.3} parent=35 // pred_region
        %296 = vst [vmem:[#allocation2] sm:$0xff] 0.0
        %297 = vst [vmem:[#allocation2 + $0x8] sm:$0xff] 0.0
        %298 = vst [vmem:[#allocation2 + $0x10] sm:$0xff] 0.0
        %299 = vst [vmem:[#allocation2 + $0x18] sm:$0xff] 0.0
        %300 = vst [vmem:[#allocation2 + $0x20] sm:$0xff] 0.0
        %301 = vst [vmem:[#allocation2 + $0x28] sm:$0xff] 0.0
        %302 = vst [vmem:[#allocation2 + $0x30] sm:$0xff] 0.0
        %303 = vst [vmem:[#allocation2 + $0x38] sm:$0xff] 0.0
        %304 = vst [vmem:[#allocation2 + $0x40] sm:$0xff] 0.0
        %305 = vst [vmem:[#allocation2 + $0x48] sm:$0xff] 0.0
        %306 = vst [vmem:[#allocation2 + $0x50] sm:$0xff] 0.0
        %307 = vst [vmem:[#allocation2 + $0x58] sm:$0xff] 0.0
        %308 = vst [vmem:[#allocation2 + $0x60] sm:$0xff] 0.0
        %309 = vst [vmem:[#allocation2 + $0x68] sm:$0xff] 0.0
        %310 = vst [vmem:[#allocation2 + $0x70] sm:$0xff] 0.0
        %311 = vst [vmem:[#allocation2 + $0x78] sm:$0xff] 0.0
      $region40: #{graphcl_encoder_forward.3} parent=35 // pred_fallthru
        _
      %v312 = vld [vmem:[#allocation2] sm:$0xff]
      %v313 = vld [vmem:[#allocation2 + $0x8] sm:$0xff]
      %v314 = vld [vmem:[#allocation2 + $0x10] sm:$0xff]
      %v315 = vld [vmem:[#allocation2 + $0x18] sm:$0xff]
      %v316 = vld [vmem:[#allocation2 + $0x20] sm:$0xff]
      %v317 = vld [vmem:[#allocation2 + $0x28] sm:$0xff]
      %v318 = vld [vmem:[#allocation2 + $0x30] sm:$0xff]
      %v319 = vld [vmem:[#allocation2 + $0x38] sm:$0xff]
      %v320 = vld [vmem:[#allocation2 + $0x40] sm:$0xff]
      %v321 = vld [vmem:[#allocation2 + $0x48] sm:$0xff]
      %v322 = vld [vmem:[#allocation2 + $0x50] sm:$0xff]
      %v323 = vld [vmem:[#allocation2 + $0x58] sm:$0xff]
      %v324 = vld [vmem:[#allocation2 + $0x60] sm:$0xff]
      %v325 = vld [vmem:[#allocation2 + $0x68] sm:$0xff]
      %v326 = vld [vmem:[#allocation2 + $0x70] sm:$0xff]
      %v327 = vld [vmem:[#allocation2 + $0x78] sm:$0xff]
      %v328 = vld [vmem:[%s269] sm:$0xf]
      %v329 = vld [vmem:[%s269 + $0x4] sm:$0xf]
      %v330 = vld [vmem:[%s269 + $0x8] sm:$0xf]
      %v331 = vld [vmem:[%s269 + $0xc] sm:$0xf]
      %v332 = vld [vmem:[%s269 + $0x10] sm:$0xf]
      %v333 = vld [vmem:[%s269 + $0x14] sm:$0xf]
      %v334 = vld [vmem:[%s269 + $0x18] sm:$0xf]
      %v335 = vld [vmem:[%s269 + $0x1c] sm:$0xf]
      %v336 = vld [vmem:[%s269 + $0x20] sm:$0xf]
      %v337 = vld [vmem:[%s269 + $0x24] sm:$0xf]
      %v338 = vld [vmem:[%s269 + $0x28] sm:$0xf]
      %v339 = vld [vmem:[%s269 + $0x2c] sm:$0xf]
      %v340 = vld [vmem:[%s269 + $0x30] sm:$0xf]
      %v341 = vld [vmem:[%s269 + $0x34] sm:$0xf]
      %v342 = vld [vmem:[%s269 + $0x38] sm:$0xf]
      %v343 = vld [vmem:[%s269 + $0x3c] sm:$0xf]
      %v344 = vld [vmem:[%s279] sm:$0xf]
      %v345 = vld [vmem:[%s279 + $0x4] sm:$0xf]
      %v346 = vld [vmem:[%s279 + $0x8] sm:$0xf]
      %v347 = vld [vmem:[%s279 + $0xc] sm:$0xf]
      %v348 = vld [vmem:[%s279 + $0x10] sm:$0xf]
      %v349 = vld [vmem:[%s279 + $0x14] sm:$0xf]
      %v350 = vld [vmem:[%s279 + $0x18] sm:$0xf]
      %v351 = vld [vmem:[%s279 + $0x1c] sm:$0xf]
      %v352 = vld [vmem:[%s279 + $0x20] sm:$0xf]
      %v353 = vld [vmem:[%s279 + $0x24] sm:$0xf]
      %v354 = vld [vmem:[%s279 + $0x28] sm:$0xf]
      %v355 = vld [vmem:[%s279 + $0x2c] sm:$0xf]
      %v356 = vld [vmem:[%s279 + $0x30] sm:$0xf]
      %v357 = vld [vmem:[%s279 + $0x34] sm:$0xf]
      %v358 = vld [vmem:[%s279 + $0x38] sm:$0xf]
      %v359 = vld [vmem:[%s279 + $0x3c] sm:$0xf]
      %v376 = vunpack.c.l.b16 %v328
      %v377 = vunpack.c.l.b16 %v329
      %v378 = vunpack.c.l.b16 %v330
      %v379 = vunpack.c.l.b16 %v331
      %v380 = vunpack.c.l.b16 %v332
      %v381 = vunpack.c.l.b16 %v333
      %v382 = vunpack.c.l.b16 %v334
      %v383 = vunpack.c.l.b16 %v335
      %v384 = vunpack.c.l.b16 %v336
      %v385 = vunpack.c.l.b16 %v337
      %v386 = vunpack.c.l.b16 %v338
      %v387 = vunpack.c.l.b16 %v339
      %v388 = vunpack.c.l.b16 %v340
      %v389 = vunpack.c.l.b16 %v341
      %v390 = vunpack.c.l.b16 %v342
      %v391 = vunpack.c.l.b16 %v343
      %v392 = vpack.c.b16 %v377, %v376
      %v393 = vpack.c.b16 %v379, %v378
      %v394 = vpack.c.b16 %v381, %v380
      %v395 = vpack.c.b16 %v383, %v382
      %v396 = vpack.c.b16 %v385, %v384
      %v397 = vpack.c.b16 %v387, %v386
      %v398 = vpack.c.b16 %v389, %v388
      %v399 = vpack.c.b16 %v391, %v390
      %v424 = vunpack.c.l.b16 %v344
      %v425 = vunpack.c.l.b16 %v345
      %v426 = vunpack.c.l.b16 %v346
      %v427 = vunpack.c.l.b16 %v347
      %v428 = vunpack.c.l.b16 %v348
      %v429 = vunpack.c.l.b16 %v349
      %v430 = vunpack.c.l.b16 %v350
      %v431 = vunpack.c.l.b16 %v351
      %v432 = vunpack.c.l.b16 %v352
      %v433 = vunpack.c.l.b16 %v353
      %v434 = vunpack.c.l.b16 %v354
      %v435 = vunpack.c.l.b16 %v355
      %v436 = vunpack.c.l.b16 %v356
      %v437 = vunpack.c.l.b16 %v357
      %v438 = vunpack.c.l.b16 %v358
      %v439 = vunpack.c.l.b16 %v359
      %v440 = vpack.c.b16 %v425, %v424
      %v441 = vpack.c.b16 %v427, %v426
      %v442 = vpack.c.b16 %v429, %v428
      %v443 = vpack.c.b16 %v431, %v430
      %v444 = vpack.c.b16 %v433, %v432
      %v445 = vpack.c.b16 %v435, %v434
      %v446 = vpack.c.b16 %v437, %v436
      %v447 = vpack.c.b16 %v439, %v438
      %456 = vmatprep.subr.bf16.mxu0 0
      %457 = vmatpush1.bf16.msra.mxu0 %v447
      %458 = vmatprep.subr.bf16.mxu0 0
      %459 = vmatpush1.bf16.msra.mxu0 %v446
      %460 = vmatprep.subr.bf16.mxu0 0
      %461 = vmatpush1.bf16.msra.mxu0 %v445
      %462 = vmatprep.subr.bf16.mxu0 0
      %463 = vmatpush1.bf16.msra.mxu0 %v444
      %464 = vmatprep.subr.bf16.mxu0 0
      %465 = vmatpush1.bf16.msra.mxu0 %v443
      %466 = vmatprep.subr.bf16.mxu0 0
      %467 = vmatpush1.bf16.msra.mxu0 %v442
      %468 = vmatprep.subr.bf16.mxu0 0
      %469 = vmatpush1.bf16.msra.mxu0 %v441
      %470 = vmatprep.subr.bf16.mxu0 0
      %471 = vmatpush1.bf16.msra.mxu0 %v440
      %472 = vmatprep.subr.bf16.mxu0 0
      %473 = vmatpush2.bf16.msra.mxu0 0
      %474 = vmatprep.subr.bf16.mxu0 0
      %475 = vmatpush2.bf16.msra.mxu0 0
      %476 = vmatprep.subr.bf16.mxu0 0
      %477 = vmatpush2.bf16.msra.mxu0 0
      %478 = vmatprep.subr.bf16.mxu0 0
      %479 = vmatpush2.bf16.msra.mxu0 0
      %480 = vmatprep.subr.bf16.mxu0 0
      %481 = vmatpush2.bf16.msra.mxu0 0
      %482 = vmatprep.subr.bf16.mxu0 0
      %483 = vmatpush2.bf16.msra.mxu0 0
      %484 = vmatprep.subr.bf16.mxu0 0
      %485 = vmatpush2.bf16.msra.mxu0 0
      %486 = vmatprep.subr.bf16.mxu0 0
      %487 = vmatpush2.bf16.msra.mxu0 0
      %488 = vmatprep.mubr.bf16.mxu0 0
      %489 = vmatmul.mubr.bf16.gmra.mxu0 %v392
      %v490 = vpop.f32.mrf.mxu0
      %v491 = vadd.f32 0.0, %v490
      %v492 = vpop.f32.mrf.mxu0
      %v493 = vpop.f32.mrf.mxu0
      %v494 = vadd.f32 0.0, %v493
      %v495 = vpop.f32.mrf.mxu0
      %496 = vmatprep.mubr.bf16.mxu0 0
      %497 = vmatmul.mubr.bf16.gmra.mxu0 %v393
      %v498 = vpop.f32.mrf.mxu0
      %v499 = vadd.f32 0.0, %v498
      %v500 = vpop.f32.mrf.mxu0
      %v501 = vpop.f32.mrf.mxu0
      %v502 = vadd.f32 0.0, %v501
      %v503 = vpop.f32.mrf.mxu0
      %504 = vmatprep.mubr.bf16.mxu0 0
      %505 = vmatmul.mubr.bf16.gmra.mxu0 %v394
      %v506 = vpop.f32.mrf.mxu0
      %v507 = vadd.f32 0.0, %v506
      %v508 = vpop.f32.mrf.mxu0
      %v509 = vpop.f32.mrf.mxu0
      %v510 = vadd.f32 0.0, %v509
      %v511 = vpop.f32.mrf.mxu0
      %512 = vmatprep.mubr.bf16.mxu0 0
      %513 = vmatmul.mubr.bf16.gmra.mxu0 %v395
      %v514 = vpop.f32.mrf.mxu0
      %v515 = vadd.f32 0.0, %v514
      %v516 = vpop.f32.mrf.mxu0
      %v517 = vpop.f32.mrf.mxu0
      %v518 = vadd.f32 0.0, %v517
      %v519 = vpop.f32.mrf.mxu0
      %520 = vmatprep.mubr.bf16.mxu0 0
      %521 = vmatmul.mubr.bf16.gmra.mxu0 %v396
      %v522 = vpop.f32.mrf.mxu0
      %v523 = vadd.f32 0.0, %v522
      %v524 = vpop.f32.mrf.mxu0
      %v525 = vpop.f32.mrf.mxu0
      %v526 = vadd.f32 0.0, %v525
      %v527 = vpop.f32.mrf.mxu0
      %528 = vmatprep.mubr.bf16.mxu0 0
      %529 = vmatmul.mubr.bf16.gmra.mxu0 %v397
      %v530 = vpop.f32.mrf.mxu0
      %v531 = vadd.f32 0.0, %v530
      %v532 = vpop.f32.mrf.mxu0
      %v533 = vpop.f32.mrf.mxu0
      %v534 = vadd.f32 0.0, %v533
      %v535 = vpop.f32.mrf.mxu0
      %536 = vmatprep.mubr.bf16.mxu0 0
      %537 = vmatmul.mubr.bf16.gmra.mxu0 %v398
      %v538 = vpop.f32.mrf.mxu0
      %v539 = vadd.f32 0.0, %v538
      %v540 = vpop.f32.mrf.mxu0
      %v541 = vpop.f32.mrf.mxu0
      %v542 = vadd.f32 0.0, %v541
      %v543 = vpop.f32.mrf.mxu0
      %544 = vmatprep.mubr.bf16.mxu0 0
      %545 = vmatmul.mubr.bf16.gmra.mxu0 %v399
      %v546 = vpop.f32.mrf.mxu0
      %v547 = vadd.f32 0.0, %v546
      %v548 = vpop.f32.mrf.mxu0
      %v549 = vpop.f32.mrf.mxu0
      %v550 = vadd.f32 0.0, %v549
      %v551 = vpop.f32.mrf.mxu0
      %552 = vdwg.mxu0
      %v553 = vadd.f32 %v312, %v491
      %v554 = vadd.f32 %v313, %v494
      %v555 = vadd.f32 %v314, %v499
      %v556 = vadd.f32 %v315, %v502
      %v557 = vadd.f32 %v316, %v507
      %v558 = vadd.f32 %v317, %v510
      %v559 = vadd.f32 %v318, %v515
      %v560 = vadd.f32 %v319, %v518
      %v561 = vadd.f32 %v320, %v523
      %v562 = vadd.f32 %v321, %v526
      %v563 = vadd.f32 %v322, %v531
      %v564 = vadd.f32 %v323, %v534
      %v565 = vadd.f32 %v324, %v539
      %v566 = vadd.f32 %v325, %v542
      %v567 = vadd.f32 %v326, %v547
      %v568 = vadd.f32 %v327, %v550
      %569 = vst [vmem:[#allocation2] sm:$0xff] %v553
      %570 = vst [vmem:[#allocation2 + $0x8] sm:$0xff] %v554
      %571 = vst [vmem:[#allocation2 + $0x10] sm:$0xff] %v555
      %572 = vst [vmem:[#allocation2 + $0x18] sm:$0xff] %v556
      %573 = vst [vmem:[#allocation2 + $0x20] sm:$0xff] %v557
      %574 = vst [vmem:[#allocation2 + $0x28] sm:$0xff] %v558
      %575 = vst [vmem:[#allocation2 + $0x30] sm:$0xff] %v559
      %576 = vst [vmem:[#allocation2 + $0x38] sm:$0xff] %v560
      %577 = vst [vmem:[#allocation2 + $0x40] sm:$0xff] %v561
      %578 = vst [vmem:[#allocation2 + $0x48] sm:$0xff] %v562
      %579 = vst [vmem:[#allocation2 + $0x50] sm:$0xff] %v563
      %580 = vst [vmem:[#allocation2 + $0x58] sm:$0xff] %v564
      %581 = vst [vmem:[#allocation2 + $0x60] sm:$0xff] %v565
      %582 = vst [vmem:[#allocation2 + $0x68] sm:$0xff] %v566
      %583 = vst [vmem:[#allocation2 + $0x70] sm:$0xff] %v567
      %584 = vst [vmem:[#allocation2 + $0x78] sm:$0xff] %v568
      // Predicated region
      $region41: #{graphcl_encoder_forward.3} parent=35 // pred_check
        %p585 = pneg %p292
      $region42: #{graphcl_encoder_forward.3} parent=35 // pred_check_branch
        %587 = sbr.rel (%p585) target = $region44
      $region43: #{graphcl_encoder_forward.3} parent=35 // pred_region
        %v588 = vld [vmem:[#allocation2] sm:$0xff]
        %v589 = vld [vmem:[#allocation2 + $0x8] sm:$0xff]
        %v590 = vld [vmem:[#allocation2 + $0x10] sm:$0xff]
        %v591 = vld [vmem:[#allocation2 + $0x18] sm:$0xff]
        %v592 = vld [vmem:[#allocation2 + $0x20] sm:$0xff]
        %v593 = vld [vmem:[#allocation2 + $0x28] sm:$0xff]
        %v594 = vld [vmem:[#allocation2 + $0x30] sm:$0xff]
        %v595 = vld [vmem:[#allocation2 + $0x38] sm:$0xff]
        %v596 = vld [vmem:[#allocation2 + $0x40] sm:$0xff]
        %v597 = vld [vmem:[#allocation2 + $0x48] sm:$0xff]
        %v598 = vld [vmem:[#allocation2 + $0x50] sm:$0xff]
        %v599 = vld [vmem:[#allocation2 + $0x58] sm:$0xff]
        %v600 = vld [vmem:[#allocation2 + $0x60] sm:$0xff]
        %v601 = vld [vmem:[#allocation2 + $0x68] sm:$0xff]
        %v602 = vld [vmem:[#allocation2 + $0x70] sm:$0xff]
        %v603 = vld [vmem:[#allocation2 + $0x78] sm:$0xff]
        %v604 = vpack.c.bf16 %v589, %v588
        %v605 = vpack.c.bf16 %v591, %v590
        %v606 = vpack.c.bf16 %v593, %v592
        %v607 = vpack.c.bf16 %v595, %v594
        %v608 = vpack.c.bf16 %v597, %v596
        %v609 = vpack.c.bf16 %v599, %v598
        %v610 = vpack.c.bf16 %v601, %v600
        %v611 = vpack.c.bf16 %v603, %v602
        %v612 = vld [vmem:[%s2] sm:$0xf]
        %v613 = vld [vmem:[%s2 + $0x4] sm:$0xf]
        %v614 = vld [vmem:[%s2 + $0x8] sm:$0xf]
        %v615 = vld [vmem:[%s2 + $0xc] sm:$0xf]
        %v616 = vld [vmem:[%s2 + $0x10] sm:$0xf]
        %v617 = vld [vmem:[%s2 + $0x14] sm:$0xf]
        %v618 = vld [vmem:[%s2 + $0x18] sm:$0xf]
        %v619 = vld [vmem:[%s2 + $0x1c] sm:$0xf]
        %v620 = vld [vmem:[%s2 + $0x20] sm:$0xf]
        %v621 = vld [vmem:[%s2 + $0x24] sm:$0xf]
        %v622 = vld [vmem:[%s2 + $0x28] sm:$0xf]
        %v623 = vld [vmem:[%s2 + $0x2c] sm:$0xf]
        %v624 = vld [vmem:[%s2 + $0x30] sm:$0xf]
        %v625 = vld [vmem:[%s2 + $0x34] sm:$0xf]
        %v626 = vld [vmem:[%s2 + $0x38] sm:$0xf]
        %v627 = vld [vmem:[%s2 + $0x3c] sm:$0xf]
        %v628 = vld [vmem:[%s3] sm:$0x1]
        %v630 = vlaneseq
        %v631 = vshrl.u32 %v630, 7
        %v632 = vsub.s32 0, %v631
        %v633 = vrot.slane %v628, %v632
        %v651 = vunpack.c.l.b16 %v612
        %v652 = vunpack.c.l.b16 %v613
        %v653 = vunpack.c.l.b16 %v614
        %v654 = vunpack.c.l.b16 %v615
        %v655 = vunpack.c.l.b16 %v616
        %v656 = vunpack.c.l.b16 %v617
        %v657 = vunpack.c.l.b16 %v618
        %v658 = vunpack.c.l.b16 %v619
        %v659 = vunpack.c.l.b16 %v620
        %v660 = vunpack.c.l.b16 %v621
        %v661 = vunpack.c.l.b16 %v622
        %v662 = vunpack.c.l.b16 %v623
        %v663 = vunpack.c.l.b16 %v624
        %v664 = vunpack.c.l.b16 %v625
        %v665 = vunpack.c.l.b16 %v626
        %v666 = vunpack.c.l.b16 %v627
        %v667 = vpack.c.b16 %v652, %v651
        %v668 = vpack.c.b16 %v654, %v653
        %v669 = vpack.c.b16 %v656, %v655
        %v670 = vpack.c.b16 %v658, %v657
        %v671 = vpack.c.b16 %v660, %v659
        %v672 = vpack.c.b16 %v662, %v661
        %v673 = vpack.c.b16 %v664, %v663
        %v674 = vpack.c.b16 %v666, %v665
        %683 = vmatprep.subr.bf16.mxu0 0
        %684 = vmatpush1.bf16.msra.mxu0 %v674
        %685 = vmatprep.subr.bf16.mxu0 0
        %686 = vmatpush1.bf16.msra.mxu0 %v673
        %687 = vmatprep.subr.bf16.mxu0 0
        %688 = vmatpush1.bf16.msra.mxu0 %v672
        %689 = vmatprep.subr.bf16.mxu0 0
        %690 = vmatpush1.bf16.msra.mxu0 %v671
        %691 = vmatprep.subr.bf16.mxu0 0
        %692 = vmatpush1.bf16.msra.mxu0 %v670
        %693 = vmatprep.subr.bf16.mxu0 0
        %694 = vmatpush1.bf16.msra.mxu0 %v669
        %695 = vmatprep.subr.bf16.mxu0 0
        %696 = vmatpush1.bf16.msra.mxu0 %v668
        %697 = vmatprep.subr.bf16.mxu0 0
        %698 = vmatpush1.bf16.msra.mxu0 %v667
        %699 = vmatprep.subr.bf16.mxu0 0
        %700 = vmatpush2.bf16.msra.mxu0 0
        %701 = vmatprep.subr.bf16.mxu0 0
        %702 = vmatpush2.bf16.msra.mxu0 0
        %703 = vmatprep.subr.bf16.mxu0 0
        %704 = vmatpush2.bf16.msra.mxu0 0
        %705 = vmatprep.subr.bf16.mxu0 0
        %706 = vmatpush2.bf16.msra.mxu0 0
        %707 = vmatprep.subr.bf16.mxu0 0
        %708 = vmatpush2.bf16.msra.mxu0 0
        %709 = vmatprep.subr.bf16.mxu0 0
        %710 = vmatpush2.bf16.msra.mxu0 0
        %711 = vmatprep.subr.bf16.mxu0 0
        %712 = vmatpush2.bf16.msra.mxu0 0
        %713 = vmatprep.subr.bf16.mxu0 0
        %714 = vmatpush2.bf16.msra.mxu0 0
        %715 = vmatprep.mubr.bf16.mxu0 0
        %716 = vmatmul.mubr.bf16.gmra.mxu0 %v604
        %v717 = vpop.f32.mrf.mxu0
        %v718 = vadd.f32 %v633, %v717
        %v719 = vpop.f32.mrf.mxu0
        %v720 = vpop.f32.mrf.mxu0
        %v721 = vadd.f32 %v633, %v720
        %v722 = vpop.f32.mrf.mxu0
        %723 = vmatprep.mubr.bf16.mxu0 0
        %724 = vmatmul.mubr.bf16.gmra.mxu0 %v605
        %v725 = vpop.f32.mrf.mxu0
        %v726 = vadd.f32 %v633, %v725
        %v727 = vpop.f32.mrf.mxu0
        %v728 = vpop.f32.mrf.mxu0
        %v729 = vadd.f32 %v633, %v728
        %v730 = vpop.f32.mrf.mxu0
        %731 = vmatprep.mubr.bf16.mxu0 0
        %732 = vmatmul.mubr.bf16.gmra.mxu0 %v606
        %v733 = vpop.f32.mrf.mxu0
        %v734 = vadd.f32 %v633, %v733
        %v735 = vpop.f32.mrf.mxu0
        %v736 = vpop.f32.mrf.mxu0
        %v737 = vadd.f32 %v633, %v736
        %v738 = vpop.f32.mrf.mxu0
        %739 = vmatprep.mubr.bf16.mxu0 0
        %740 = vmatmul.mubr.bf16.gmra.mxu0 %v607
        %v741 = vpop.f32.mrf.mxu0
        %v742 = vadd.f32 %v633, %v741
        %v743 = vpop.f32.mrf.mxu0
        %v744 = vpop.f32.mrf.mxu0
        %v745 = vadd.f32 %v633, %v744
        %v746 = vpop.f32.mrf.mxu0
        %747 = vmatprep.mubr.bf16.mxu0 0
        %748 = vmatmul.mubr.bf16.gmra.mxu0 %v608
        %v749 = vpop.f32.mrf.mxu0
        %v750 = vadd.f32 %v633, %v749
        %v751 = vpop.f32.mrf.mxu0
        %v752 = vpop.f32.mrf.mxu0
        %v753 = vadd.f32 %v633, %v752
        %v754 = vpop.f32.mrf.mxu0
        %755 = vmatprep.mubr.bf16.mxu0 0
        %756 = vmatmul.mubr.bf16.gmra.mxu0 %v609
        %v757 = vpop.f32.mrf.mxu0
        %v758 = vadd.f32 %v633, %v757
        %v759 = vpop.f32.mrf.mxu0
        %v760 = vpop.f32.mrf.mxu0
        %v761 = vadd.f32 %v633, %v760
        %v762 = vpop.f32.mrf.mxu0
        %763 = vmatprep.mubr.bf16.mxu0 0
        %764 = vmatmul.mubr.bf16.gmra.mxu0 %v610
        %v765 = vpop.f32.mrf.mxu0
        %v766 = vadd.f32 %v633, %v765
        %v767 = vpop.f32.mrf.mxu0
        %v768 = vpop.f32.mrf.mxu0
        %v769 = vadd.f32 %v633, %v768
        %v770 = vpop.f32.mrf.mxu0
        %771 = vmatprep.mubr.bf16.mxu0 0
        %772 = vmatmul.mubr.bf16.gmra.mxu0 %v611
        %v773 = vpop.f32.mrf.mxu0
        %v774 = vadd.f32 %v633, %v773
        %v775 = vpop.f32.mrf.mxu0
        %v776 = vpop.f32.mrf.mxu0
        %v777 = vadd.f32 %v633, %v776
        %v778 = vpop.f32.mrf.mxu0
        %779 = vdwg.mxu0
        %v780 = vmax.f32 %v718, 0.0
        %v781 = vmax.f32 %v721, 0.0
        %v782 = vmax.f32 %v726, 0.0
        %v783 = vmax.f32 %v729, 0.0
        %v784 = vmax.f32 %v734, 0.0
        %v785 = vmax.f32 %v737, 0.0
        %v786 = vmax.f32 %v742, 0.0
        %v787 = vmax.f32 %v745, 0.0
        %v788 = vmax.f32 %v750, 0.0
        %v789 = vmax.f32 %v753, 0.0
        %v790 = vmax.f32 %v758, 0.0
        %v791 = vmax.f32 %v761, 0.0
        %v792 = vmax.f32 %v766, 0.0
        %v793 = vmax.f32 %v769, 0.0
        %v794 = vmax.f32 %v774, 0.0
        %v795 = vmax.f32 %v777, 0.0
        %796 = vst [vmem:[%s289] sm:$0xff] %v780
        %797 = vst [vmem:[%s289 + $0x8] sm:$0xff] %v781
        %798 = vst [vmem:[%s289 + $0x10] sm:$0xff] %v782
        %799 = vst [vmem:[%s289 + $0x18] sm:$0xff] %v783
        %800 = vst [vmem:[%s289 + $0x20] sm:$0xff] %v784
        %801 = vst [vmem:[%s289 + $0x28] sm:$0xff] %v785
        %802 = vst [vmem:[%s289 + $0x30] sm:$0xff] %v786
        %803 = vst [vmem:[%s289 + $0x38] sm:$0xff] %v787
        %804 = vst [vmem:[%s289 + $0x40] sm:$0xff] %v788
        %805 = vst [vmem:[%s289 + $0x48] sm:$0xff] %v789
        %806 = vst [vmem:[%s289 + $0x50] sm:$0xff] %v790
        %807 = vst [vmem:[%s289 + $0x58] sm:$0xff] %v791
        %808 = vst [vmem:[%s289 + $0x60] sm:$0xff] %v792
        %809 = vst [vmem:[%s289 + $0x68] sm:$0xff] %v793
        %810 = vst [vmem:[%s289 + $0x70] sm:$0xff] %v794
        %811 = vst [vmem:[%s289 + $0x78] sm:$0xff] %v795
      $region44: #{graphcl_encoder_forward.3} parent=35 // pred_fallthru
        _
      %s812 = smul.u32 16, %s21
      %p813 = scmp.lt.s32.totalorder %s20, 2
      %s814 = scalar_select %p813, %s20, 2
      %p815 = scmp.lt.s32.totalorder %s812, 15
      %s816 = scalar_select %p815, %s812, 15
      %s817 = smul.addr %s814, 16
      %s818 = sadd.s32 %s816, %s817
      %s819 = smul.addr %s818, 8
      %s820 = scalar_lea.vmem %s4, %s819
      // Predicated region
      $region45: #{graphcl_encoder_forward.3} parent=35 // pred_check
        %p821 = pneg %p154
      $region46: #{graphcl_encoder_forward.3} parent=35 // pred_check_branch
        %823 = sbr.rel (%p821) target = $region48
      $region47: #{graphcl_encoder_forward.3} parent=35 // pred_region
        %s824 = smul.u32 16, %s21
      $region48: #{graphcl_encoder_forward.3} parent=35 // pred_fallthru
        _
    $region36: #{graphcl_encoder_forward.3} parent=5 // pred_fallthru
      _
    %p825 = scmp.le.s32.totalorder 2, %s10
    // Predicated region
    $region49: #{graphcl_encoder_forward.3} parent=5 // pred_check
      %p826 = pneg %p825
    $region50: #{graphcl_encoder_forward.3} parent=5 // pred_check_branch
      %828 = sbr.rel (%p826) target = $region52
    $region51: #{graphcl_encoder_forward.3} parent=5 // pred_region
      %s829 = ssub.s32 %s10, 2
      // Predicated region
      $region53: #{graphcl_encoder_forward.3} parent=51 // pred_check
        %p830 = pneg %p160
      $region54: #{graphcl_encoder_forward.3} parent=51 // pred_check_branch
        %832 = sbr.rel (%p830) target = $region56
      $region55: #{graphcl_encoder_forward.3} parent=51 // pred_region
        %s833 = smul.u32 16, %s24
        %p834 = scmp.lt.s32.totalorder %s23, 2
        %s835 = scalar_select %p834, %s23, 2
        %p836 = scmp.lt.s32.totalorder %s833, 15
        %s837 = scalar_select %p836, %s833, 15
        %s838 = smul.addr %s835, 16
        %s839 = sadd.s32 %s837, %s838
        %s840 = smul.addr %s839, 8
        %s841 = scalar_lea.vmem %s4, %s840
      $region56: #{graphcl_encoder_forward.3} parent=51 // pred_fallthru
        _
    $region52: #{graphcl_encoder_forward.3} parent=5 // pred_fallthru
      _
  $region6: #{graphcl_encoder_forward.3} parent=0 // loop_footer
    %s14 = sadd.s32 1, %s10
  $region7: #{graphcl_encoder_forward.3} parent=0 // loop_footer_branch
    %9 = sbr.rel target = $region3
  $region8: #{graphcl_encoder_forward.3} parent=0 // loop_exit
    _

// kernel: graphcl_encoder_forward.2
$region0: #{graphcl_encoder_forward.2}
  #allocation0 [shape = 'u32[]', space=smem, size = 0x4, offset = 0x4, fixed_abs, tag = 'smem constant byte address 0x4 - core index']
  #allocation1 [shape = 'u32[144,128]{1,0:T(1,128)}', space=vmem, size = 0x12000, scoped, tag = 'internal scratch']
  #allocation2 [shape = 'f32[128,8]{1,0:T(8,128)}', space=vmem, size = 0x10000, scoped, tag = 'scratch operand']
  %s0 = inlined_call_operand.vmem [shape: bf16[3,128,128], index: 0, kind: input, shape index: {}]
  %s1 = inlined_call_operand.vmem [shape: bf16[3,128,8], index: 1, kind: input, shape index: {}]
  %s2 = inlined_call_operand.vmem [shape: bf16[8,128], index: 2, kind: input, shape index: {}]
  %s3 = inlined_call_operand.vmem [shape: f32[1,128], index: 3, kind: input, shape index: {}]
  %s4 = inlined_call_operand.vmem [shape: bf16[3,128,128], index: 4, kind: output, shape index: {}]
  %s5 = sld [smem:[#allocation0]]
  $region57: #{graphcl_encoder_forward.2} parent=0
    _
  %s7 = ssub.s32 1, %s5
  %s8 = scalar_select 0, %s7, %s5
  loop: start=0, step=1, limit=5
  $region2: #{graphcl_encoder_forward.2} parent=0 // loop_pre_header
    _
  $region3: #{graphcl_encoder_forward.2} parent=0 // loop_header
    %s10 = sphi 0, %s14
    %p11 = scmp.ge.s32.totalorder %s10, 5
    %s17 = sphi 0, %s36
    %s18 = sphi 0, %s32
    %s19 = sphi 0, %s28
    %s20 = sphi 0, %s17
    %s21 = sphi 0, %s18
    %s22 = sphi 0, %s19
    %s23 = sphi 0, %s20
    %s24 = sphi 0, %s21
    %s25 = sphi 0, %s22
    %s43 = sphi 0, %s45
    %s46 = sphi 0, %s43
    %s47 = sphi 0, %s46
    %s63 = sphi 0, %s47
    %s71 = sphi 0, %s73
    %s74 = sphi 0, %s71
    %s75 = sphi 0, %s74
    %s91 = sphi 0, %s75
    %s95 = sphi 0, %s95
    %s97 = sphi 0, %s95
    %s98 = sphi 0, %s97
    %s112 = sphi 0, %s98
    %s116 = sphi 0, %s116
    %s118 = sphi 0, %s116
    %s119 = sphi 0, %s118
    %s133 = sphi 0, %s119
    %s141 = sphi 0, %s143
    %s144 = sphi 0, %s141
    %s145 = sphi 0, %s144
    %s161 = sphi 0, %s145
  $region4: #{graphcl_encoder_forward.2} parent=0 // loop_header_branch
    %13 = sbr.rel (%p11) target = $region8
  $region5: #{graphcl_encoder_forward.2} parent=0 // loop_body
    %s15 = ssub.s32 %s10, 1
    %s16 = ssub.s32 %s10, 2
    %s26 = sadd.s32 1, %s19
    %p27 = scmp.ge.s32.totalorder %s26, 1
    %s28 = scalar_select %p27, 0, %s26
    %s29 = sadd.s32 1, %s18
    %s30 = scalar_select %p27, %s29, %s18
    %p31 = scmp.ge.s32.totalorder %s30, 1
    %s32 = scalar_select %p31, 0, %s30
    %s33 = sadd.s32 1, %s17
    %s34 = scalar_select %p31, %s33, %s17
    %p35 = scmp.ge.s32.totalorder %s34, 3
    %s36 = scalar_select %p35, 0, %s34
    %s37 = ssub.s32 %s17, %s36
    %s38 = ssub.s32 %s18, %s32
    %s39 = sor.u32 %s37, %s38
    %s40 = ssub.s32 %s19, %s28
    %s41 = sor.u32 %s39, %s40
    %p42 = scmp.eq.s32.totalorder %s41, 0
    %s44 = sadd.s32 %s43, 1
    %s45 = scalar_select %p42, %s43, %s44
    %p48 = pneg %p42
    %p49 = scmp.eq.s32.totalorder %s10, 2
    %p50 = por %p48, %p49
    %p51 = scmp.ne.s32.totalorder %s43, %s46
    %p52 = scmp.eq.s32.totalorder %s10, 0
    %p53 = por %p51, %p52
    %p54 = scmp.ne.s32.totalorder %s43, %s46
    %p55 = scmp.eq.s32.totalorder %s15, 2
    %p56 = por %p54, %p55
    %p57 = scmp.ne.s32.totalorder %s46, %s47
    %p58 = scmp.eq.s32.totalorder %s15, 0
    %p59 = por %p57, %p58
    %p60 = scmp.ne.s32.totalorder %s46, %s47
    %p61 = scmp.eq.s32.totalorder %s16, 2
    %p62 = por %p60, %p61
    %p64 = scmp.ne.s32.totalorder %s47, %s63
    %p65 = scmp.eq.s32.totalorder %s16, 0
    %p66 = por %p64, %p65
    %s67 = ssub.s32 %s17, %s36
    %s68 = ssub.s32 %s19, %s28
    %s69 = sor.u32 %s67, %s68
    %p70 = scmp.eq.s32.totalorder %s69, 0
    %s72 = sadd.s32 %s71, 1
    %s73 = scalar_select %p70, %s71, %s72
    %p76 = pneg %p70
    %p77 = scmp.eq.s32.totalorder %s10, 2
    %p78 = por %p76, %p77
    %p79 = scmp.ne.s32.totalorder %s71, %s74
    %p80 = scmp.eq.s32.totalorder %s10, 0
    %p81 = por %p79, %p80
    %p82 = scmp.ne.s32.totalorder %s71, %s74
    %p83 = scmp.eq.s32.totalorder %s15, 2
    %p84 = por %p82, %p83
    %p85 = scmp.ne.s32.totalorder %s74, %s75
    %p86 = scmp.eq.s32.totalorder %s15, 0
    %p87 = por %p85, %p86
    %p88 = scmp.ne.s32.totalorder %s74, %s75
    %p89 = scmp.eq.s32.totalorder %s16, 2
    %p90 = por %p88, %p89
    %p92 = scmp.ne.s32.totalorder %s75, %s91
    %p93 = scmp.eq.s32.totalorder %s16, 0
    %p94 = por %p92, %p93
    %s96 = sadd.s32 %s95, 1
    %p99 = scmp.eq.s32.totalorder %s10, 2
    %p100 = scmp.ne.s32.totalorder %s95, %s97
    %p101 = scmp.eq.s32.totalorder %s10, 0
    %p102 = por %p100, %p101
    %p103 = scmp.ne.s32.totalorder %s95, %s97
    %p104 = scmp.eq.s32.totalorder %s15, 2
    %p105 = por %p103, %p104
    %p106 = scmp.ne.s32.totalorder %s97, %s98
    %p107 = scmp.eq.s32.totalorder %s15, 0
    %p108 = por %p106, %p107
    %p109 = scmp.ne.s32.totalorder %s97, %s98
    %p110 = scmp.eq.s32.totalorder %s16, 2
    %p111 = por %p109, %p110
    %p113 = scmp.ne.s32.totalorder %s98, %s112
    %p114 = scmp.eq.s32.totalorder %s16, 0
    %p115 = por %p113, %p114
    %s117 = sadd.s32 %s116, 1
    %p120 = scmp.eq.s32.totalorder %s10, 2
    %p121 = scmp.ne.s32.totalorder %s116, %s118
    %p122 = scmp.eq.s32.totalorder %s10, 0
    %p123 = por %p121, %p122
    %p124 = scmp.ne.s32.totalorder %s116, %s118
    %p125 = scmp.eq.s32.totalorder %s15, 2
    %p126 = por %p124, %p125
    %p127 = scmp.ne.s32.totalorder %s118, %s119
    %p128 = scmp.eq.s32.totalorder %s15, 0
    %p129 = por %p127, %p128
    %p130 = scmp.ne.s32.totalorder %s118, %s119
    %p131 = scmp.eq.s32.totalorder %s16, 2
    %p132 = por %p130, %p131
    %p134 = scmp.ne.s32.totalorder %s119, %s133
    %p135 = scmp.eq.s32.totalorder %s16, 0
    %p136 = por %p134, %p135
    %s137 = ssub.s32 %s17, %s36
    %s138 = ssub.s32 %s18, %s32
    %s139 = sor.u32 %s137, %s138
    %p140 = scmp.eq.s32.totalorder %s139, 0
    %s142 = sadd.s32 %s141, 1
    %s143 = scalar_select %p140, %s141, %s142
    %p146 = pneg %p140
    %p147 = scmp.eq.s32.totalorder %s10, 2
    %p148 = por %p146, %p147
    %p149 = scmp.ne.s32.totalorder %s141, %s144
    %p150 = scmp.eq.s32.totalorder %s10, 0
    %p151 = por %p149, %p150
    %p152 = scmp.ne.s32.totalorder %s141, %s144
    %p153 = scmp.eq.s32.totalorder %s15, 2
    %p154 = por %p152, %p153
    %p155 = scmp.ne.s32.totalorder %s144, %s145
    %p156 = scmp.eq.s32.totalorder %s15, 0
    %p157 = por %p155, %p156
    %p158 = scmp.ne.s32.totalorder %s144, %s145
    %p159 = scmp.eq.s32.totalorder %s16, 2
    %p160 = por %p158, %p159
    %p162 = scmp.ne.s32.totalorder %s145, %s161
    %p163 = scmp.eq.s32.totalorder %s16, 0
    %p164 = por %p162, %p163
    %p165 = scmp.le.s32.totalorder 1, %s10
    %p166 = scmp.lt.s32.totalorder %s10, 4
    %p167 = pnand %p165, %p166
    %p168 = pneg %p167
    // Predicated region
    $region9: #{graphcl_encoder_forward.2} parent=5 // pred_check
      _
    $region10: #{graphcl_encoder_forward.2} parent=5 // pred_check_branch
      %170 = sbr.rel (%p167) target = $region12
    $region11: #{graphcl_encoder_forward.2} parent=5 // pred_region
      %s171 = ssub.s32 %s10, 1
      // Predicated region
      $region13: #{graphcl_encoder_forward.2} parent=11 // pred_check
        %p172 = pneg %p108
      $region14: #{graphcl_encoder_forward.2} parent=11 // pred_check_branch
        %174 = sbr.rel (%p172) target = $region16
      $region15: #{graphcl_encoder_forward.2} parent=11 // pred_region
        _
      $region16: #{graphcl_encoder_forward.2} parent=11 // pred_fallthru
        _
      // Predicated region
      $region17: #{graphcl_encoder_forward.2} parent=11 // pred_check
        %p175 = pneg %p129
      $region18: #{graphcl_encoder_forward.2} parent=11 // pred_check_branch
        %177 = sbr.rel (%p175) target = $region20
      $region19: #{graphcl_encoder_forward.2} parent=11 // pred_region
        _
      $region20: #{graphcl_encoder_forward.2} parent=11 // pred_fallthru
        _
    $region12: #{graphcl_encoder_forward.2} parent=5 // pred_fallthru
      _
    %p178 = scmp.lt.s32.totalorder %s10, 3
    // Predicated region
    $region21: #{graphcl_encoder_forward.2} parent=5 // pred_check
      %p179 = pneg %p178
    $region22: #{graphcl_encoder_forward.2} parent=5 // pred_check_branch
      %181 = sbr.rel (%p179) target = $region24
    $region23: #{graphcl_encoder_forward.2} parent=5 // pred_region
      // Predicated region
      $region25: #{graphcl_encoder_forward.2} parent=23 // pred_check
        %p182 = pneg %p53
      $region26: #{graphcl_encoder_forward.2} parent=23 // pred_check_branch
        %184 = sbr.rel (%p182) target = $region28
      $region27: #{graphcl_encoder_forward.2} parent=23 // pred_region
        %s185 = smul.u32 16, %s18
        %p186 = scmp.lt.s32.totalorder %s17, 2
        %s187 = scalar_select %p186, %s17, 2
        %p188 = scmp.lt.s32.totalorder %s185, 15
        %s189 = scalar_select %p188, %s185, 15
        %p190 = scmp.lt.s32.totalorder %s19, 0
        %s191 = scalar_select %p190, %s19, 0
        %s192 = sadd.s32 %s191, %s189
        %s193 = smul.addr %s187, 16
        %s194 = sadd.s32 %s192, %s193
        %s195 = smul.addr %s194, 4
        %s196 = scalar_lea.vmem %s0, %s195
        %s197 = smul.u32 16, %s18
      $region28: #{graphcl_encoder_forward.2} parent=23 // pred_fallthru
        _
      // Predicated region
      $region29: #{graphcl_encoder_forward.2} parent=23 // pred_check
        %p198 = pneg %p81
      $region30: #{graphcl_encoder_forward.2} parent=23 // pred_check_branch
        %200 = sbr.rel (%p198) target = $region32
      $region31: #{graphcl_encoder_forward.2} parent=23 // pred_region
        %s201 = smul.u32 16, %s19
        %p202 = scmp.lt.s32.totalorder %s17, 2
        %s203 = scalar_select %p202, %s17, 2
        %p204 = scmp.lt.s32.totalorder %s201, 15
        %s205 = scalar_select %p204, %s201, 15
        %s206 = smul.addr %s203, 16
        %s207 = sadd.s32 %s205, %s206
        %s208 = smul.addr %s207, 4
        %s209 = scalar_lea.vmem %s1, %s208
        %s210 = smul.u32 16, %s19
      $region32: #{graphcl_encoder_forward.2} parent=23 // pred_fallthru
        _
    $region24: #{graphcl_encoder_forward.2} parent=5 // pred_fallthru
      _
    %p211 = scmp.le.s32.totalorder 1, %s10
    %p212 = scmp.lt.s32.totalorder %s10, 4
    %p213 = pnand %p211, %p212
    %p214 = pneg %p213
    // Predicated region
    $region33: #{graphcl_encoder_forward.2} parent=5 // pred_check
      _
    $region34: #{graphcl_encoder_forward.2} parent=5 // pred_check_branch
      %216 = sbr.rel (%p213) target = $region36
    $region35: #{graphcl_encoder_forward.2} parent=5 // pred_region
      %s217 = ssub.s32 %s10, 1
      %s218 = smul.u32 16, %s21
      %p219 = scmp.lt.s32.totalorder %s20, 2
      %s220 = scalar_select %p219, %s20, 2
      %p221 = scmp.lt.s32.totalorder %s218, 15
      %s222 = scalar_select %p221, %s218, 15
      %p223 = scmp.lt.s32.totalorder %s22, 0
      %s224 = scalar_select %p223, %s22, 0
      %s225 = sadd.s32 %s224, %s222
      %s226 = smul.addr %s220, 16
      %s227 = sadd.s32 %s225, %s226
      %s228 = smul.addr %s227, 4
      %s229 = scalar_lea.vmem %s0, %s228
      %p230 = pneg %p59
      %p231 = pneg %p56
      %s232 = smul.u32 16, %s22
      %p233 = scmp.lt.s32.totalorder %s20, 2
      %s234 = scalar_select %p233, %s20, 2
      %p235 = scmp.lt.s32.totalorder %s232, 15
      %s236 = scalar_select %p235, %s232, 15
      %s237 = smul.addr %s234, 16
      %s238 = sadd.s32 %s236, %s237
      %s239 = smul.addr %s238, 4
      %s240 = scalar_lea.vmem %s1, %s239
      %p241 = pneg %p87
      %p242 = pneg %p84
      %p243 = pneg %p108
      %p244 = pneg %p105
      %p245 = pneg %p129
      %p246 = pneg %p126
      %p247 = pneg %p157
      %p248 = pneg %p154
      %s249 = smul.u32 16, %s21
      %p250 = scmp.lt.s32.totalorder %s20, 2
      %s251 = scalar_select %p250, %s20, 2
      %p252 = scmp.lt.s32.totalorder %s249, 15
      %s253 = scalar_select %p252, %s249, 15
      %s254 = smul.addr %s251, 16
      %s255 = sadd.s32 %s253, %s254
      %s256 = smul.addr %s255, 4
      %s257 = scalar_lea.vmem %s4, %s256
      %s258 = smul.u32 16, %s21
      %p259 = scmp.lt.s32.totalorder %s20, 2
      %s260 = scalar_select %p259, %s20, 2
      %p261 = scmp.lt.s32.totalorder %s258, 15
      %s262 = scalar_select %p261, %s258, 15
      %p263 = scmp.lt.s32.totalorder %s22, 0
      %s264 = scalar_select %p263, %s22, 0
      %s265 = sadd.s32 %s264, %s262
      %s266 = smul.addr %s260, 16
      %s267 = sadd.s32 %s265, %s266
      %s268 = smul.addr %s267, 4
      %s269 = scalar_lea.vmem %s0, %s268
      %s270 = smul.u32 16, %s21
      %s271 = smul.u32 16, %s22
      %p272 = scmp.lt.s32.totalorder %s20, 2
      %s273 = scalar_select %p272, %s20, 2
      %p274 = scmp.lt.s32.totalorder %s271, 15
      %s275 = scalar_select %p274, %s271, 15
      %s276 = smul.addr %s273, 16
      %s277 = sadd.s32 %s275, %s276
      %s278 = smul.addr %s277, 4
      %s279 = scalar_lea.vmem %s1, %s278
      %s280 = smul.u32 16, %s22
      %s281 = smul.u32 16, %s21
      %p282 = scmp.lt.s32.totalorder %s20, 2
      %s283 = scalar_select %p282, %s20, 2
      %p284 = scmp.lt.s32.totalorder %s281, 15
      %s285 = scalar_select %p284, %s281, 15
      %s286 = smul.addr %s283, 16
      %s287 = sadd.s32 %s285, %s286
      %s288 = smul.addr %s287, 4
      %s289 = scalar_lea.vmem %s4, %s288
      %s290 = smul.u32 16, %s21
      %p292 = scmp.eq.s32.totalorder %s22, 0
      // Predicated region
      $region37: #{graphcl_encoder_forward.2} parent=35 // pred_check
        %p293 = pneg %p292
      $region38: #{graphcl_encoder_forward.2} parent=35 // pred_check_branch
        %295 = sbr.rel (%p293) target = $region40
      $region39: #{graphcl_encoder_forward.2} parent=35 // pred_region
        %vm296 = vcmask 64512
        %297 = vst.msk [vmem:[#allocation2] sm:$0xff] %vm296, 0.0
        %298 = vst.msk [vmem:[#allocation2 + $0x8] sm:$0xff] %vm296, 0.0
        %299 = vst.msk [vmem:[#allocation2 + $0x10] sm:$0xff] %vm296, 0.0
        %300 = vst.msk [vmem:[#allocation2 + $0x18] sm:$0xff] %vm296, 0.0
        %301 = vst.msk [vmem:[#allocation2 + $0x20] sm:$0xff] %vm296, 0.0
        %302 = vst.msk [vmem:[#allocation2 + $0x28] sm:$0xff] %vm296, 0.0
        %303 = vst.msk [vmem:[#allocation2 + $0x30] sm:$0xff] %vm296, 0.0
        %304 = vst.msk [vmem:[#allocation2 + $0x38] sm:$0xff] %vm296, 0.0
        %305 = vst.msk [vmem:[#allocation2 + $0x40] sm:$0xff] %vm296, 0.0
        %306 = vst.msk [vmem:[#allocation2 + $0x48] sm:$0xff] %vm296, 0.0
        %307 = vst.msk [vmem:[#allocation2 + $0x50] sm:$0xff] %vm296, 0.0
        %308 = vst.msk [vmem:[#allocation2 + $0x58] sm:$0xff] %vm296, 0.0
        %309 = vst.msk [vmem:[#allocation2 + $0x60] sm:$0xff] %vm296, 0.0
        %310 = vst.msk [vmem:[#allocation2 + $0x68] sm:$0xff] %vm296, 0.0
        %311 = vst.msk [vmem:[#allocation2 + $0x70] sm:$0xff] %vm296, 0.0
        %312 = vst.msk [vmem:[#allocation2 + $0x78] sm:$0xff] %vm296, 0.0
      $region40: #{graphcl_encoder_forward.2} parent=35 // pred_fallthru
        _
      %v313 = vld [vmem:[#allocation2] sm:$0xff]
      %v314 = vld [vmem:[#allocation2 + $0x8] sm:$0xff]
      %v315 = vld [vmem:[#allocation2 + $0x10] sm:$0xff]
      %v316 = vld [vmem:[#allocation2 + $0x18] sm:$0xff]
      %v317 = vld [vmem:[#allocation2 + $0x20] sm:$0xff]
      %v318 = vld [vmem:[#allocation2 + $0x28] sm:$0xff]
      %v319 = vld [vmem:[#allocation2 + $0x30] sm:$0xff]
      %v320 = vld [vmem:[#allocation2 + $0x38] sm:$0xff]
      %v321 = vld [vmem:[#allocation2 + $0x40] sm:$0xff]
      %v322 = vld [vmem:[#allocation2 + $0x48] sm:$0xff]
      %v323 = vld [vmem:[#allocation2 + $0x50] sm:$0xff]
      %v324 = vld [vmem:[#allocation2 + $0x58] sm:$0xff]
      %v325 = vld [vmem:[#allocation2 + $0x60] sm:$0xff]
      %v326 = vld [vmem:[#allocation2 + $0x68] sm:$0xff]
      %v327 = vld [vmem:[#allocation2 + $0x70] sm:$0xff]
      %v328 = vld [vmem:[#allocation2 + $0x78] sm:$0xff]
      %v329 = vld [vmem:[%s269] sm:$0xf]
      %v330 = vld [vmem:[%s269 + $0x4] sm:$0xf]
      %v331 = vld [vmem:[%s269 + $0x8] sm:$0xf]
      %v332 = vld [vmem:[%s269 + $0xc] sm:$0xf]
      %v333 = vld [vmem:[%s269 + $0x10] sm:$0xf]
      %v334 = vld [vmem:[%s269 + $0x14] sm:$0xf]
      %v335 = vld [vmem:[%s269 + $0x18] sm:$0xf]
      %v336 = vld [vmem:[%s269 + $0x1c] sm:$0xf]
      %v337 = vld [vmem:[%s269 + $0x20] sm:$0xf]
      %v338 = vld [vmem:[%s269 + $0x24] sm:$0xf]
      %v339 = vld [vmem:[%s269 + $0x28] sm:$0xf]
      %v340 = vld [vmem:[%s269 + $0x2c] sm:$0xf]
      %v341 = vld [vmem:[%s269 + $0x30] sm:$0xf]
      %v342 = vld [vmem:[%s269 + $0x34] sm:$0xf]
      %v343 = vld [vmem:[%s269 + $0x38] sm:$0xf]
      %v344 = vld [vmem:[%s269 + $0x3c] sm:$0xf]
      %v345 = vld [vmem:[%s279] sm:$0xf]
      %v346 = vld [vmem:[%s279 + $0x4] sm:$0xf]
      %v347 = vld [vmem:[%s279 + $0x8] sm:$0xf]
      %v348 = vld [vmem:[%s279 + $0xc] sm:$0xf]
      %v349 = vld [vmem:[%s279 + $0x10] sm:$0xf]
      %v350 = vld [vmem:[%s279 + $0x14] sm:$0xf]
      %v351 = vld [vmem:[%s279 + $0x18] sm:$0xf]
      %v352 = vld [vmem:[%s279 + $0x1c] sm:$0xf]
      %v353 = vld [vmem:[%s279 + $0x20] sm:$0xf]
      %v354 = vld [vmem:[%s279 + $0x24] sm:$0xf]
      %v355 = vld [vmem:[%s279 + $0x28] sm:$0xf]
      %v356 = vld [vmem:[%s279 + $0x2c] sm:$0xf]
      %v357 = vld [vmem:[%s279 + $0x30] sm:$0xf]
      %v358 = vld [vmem:[%s279 + $0x34] sm:$0xf]
      %v359 = vld [vmem:[%s279 + $0x38] sm:$0xf]
      %v360 = vld [vmem:[%s279 + $0x3c] sm:$0xf]
      %v377 = vunpack.c.l.b16 %v329
      %v378 = vunpack.c.l.b16 %v330
      %v379 = vunpack.c.l.b16 %v331
      %v380 = vunpack.c.l.b16 %v332
      %v381 = vunpack.c.l.b16 %v333
      %v382 = vunpack.c.l.b16 %v334
      %v383 = vunpack.c.l.b16 %v335
      %v384 = vunpack.c.l.b16 %v336
      %v385 = vunpack.c.l.b16 %v337
      %v386 = vunpack.c.l.b16 %v338
      %v387 = vunpack.c.l.b16 %v339
      %v388 = vunpack.c.l.b16 %v340
      %v389 = vunpack.c.l.b16 %v341
      %v390 = vunpack.c.l.b16 %v342
      %v391 = vunpack.c.l.b16 %v343
      %v392 = vunpack.c.l.b16 %v344
      %v393 = vpack.c.b16 %v378, %v377
      %v394 = vpack.c.b16 %v380, %v379
      %v395 = vpack.c.b16 %v382, %v381
      %v396 = vpack.c.b16 %v384, %v383
      %v397 = vpack.c.b16 %v386, %v385
      %v398 = vpack.c.b16 %v388, %v387
      %v399 = vpack.c.b16 %v390, %v389
      %v400 = vpack.c.b16 %v392, %v391
      %v425 = vunpack.c.l.b16 %v345
      %v426 = vunpack.c.l.b16 %v346
      %v427 = vunpack.c.l.b16 %v347
      %v428 = vunpack.c.l.b16 %v348
      %v429 = vunpack.c.l.b16 %v349
      %v430 = vunpack.c.l.b16 %v350
      %v431 = vunpack.c.l.b16 %v351
      %v432 = vunpack.c.l.b16 %v352
      %v433 = vunpack.c.l.b16 %v353
      %v434 = vunpack.c.l.b16 %v354
      %v435 = vunpack.c.l.b16 %v355
      %v436 = vunpack.c.l.b16 %v356
      %v437 = vunpack.c.l.b16 %v357
      %v438 = vunpack.c.l.b16 %v358
      %v439 = vunpack.c.l.b16 %v359
      %v440 = vunpack.c.l.b16 %v360
      %v441 = vpack.c.b16 %v426, %v425
      %v442 = vpack.c.b16 %v428, %v427
      %v443 = vpack.c.b16 %v430, %v429
      %v444 = vpack.c.b16 %v432, %v431
      %v445 = vpack.c.b16 %v434, %v433
      %v446 = vpack.c.b16 %v436, %v435
      %v447 = vpack.c.b16 %v438, %v437
      %v448 = vpack.c.b16 %v440, %v439
      %457 = vmatprep.subr.bf16.mxu0 0
      %458 = vmatpush1.bf16.msra.mxu0 %v448
      %459 = vmatprep.subr.bf16.mxu0 0
      %460 = vmatpush1.bf16.msra.mxu0 %v447
      %461 = vmatprep.subr.bf16.mxu0 0
      %462 = vmatpush1.bf16.msra.mxu0 %v446
      %463 = vmatprep.subr.bf16.mxu0 0
      %464 = vmatpush1.bf16.msra.mxu0 %v445
      %465 = vmatprep.subr.bf16.mxu0 0
      %466 = vmatpush1.bf16.msra.mxu0 %v444
      %467 = vmatprep.subr.bf16.mxu0 0
      %468 = vmatpush1.bf16.msra.mxu0 %v443
      %469 = vmatprep.subr.bf16.mxu0 0
      %470 = vmatpush1.bf16.msra.mxu0 %v442
      %471 = vmatprep.subr.bf16.mxu0 0
      %472 = vmatpush1.bf16.msra.mxu0 %v441
      %473 = vmatprep.subr.bf16.mxu0 0
      %474 = vmatpush2.bf16.msra.mxu0 0
      %475 = vmatprep.subr.bf16.mxu0 0
      %476 = vmatpush2.bf16.msra.mxu0 0
      %477 = vmatprep.subr.bf16.mxu0 0
      %478 = vmatpush2.bf16.msra.mxu0 0
      %479 = vmatprep.subr.bf16.mxu0 0
      %480 = vmatpush2.bf16.msra.mxu0 0
      %481 = vmatprep.subr.bf16.mxu0 0
      %482 = vmatpush2.bf16.msra.mxu0 0
      %483 = vmatprep.subr.bf16.mxu0 0
      %484 = vmatpush2.bf16.msra.mxu0 0
      %485 = vmatprep.subr.bf16.mxu0 0
      %486 = vmatpush2.bf16.msra.mxu0 0
      %487 = vmatprep.subr.bf16.mxu0 0
      %488 = vmatpush2.bf16.msra.mxu0 0
      %489 = vmatprep.mubr.bf16.mxu0 0
      %490 = vmatmul.mubr.bf16.gmra.mxu0 %v393
      %v491 = vpop.f32.mrf.mxu0
      %v492 = vadd.f32 0.0, %v491
      %v493 = vpop.f32.mrf.mxu0
      %v494 = vpop.f32.mrf.mxu0
      %v495 = vadd.f32 0.0, %v494
      %v496 = vpop.f32.mrf.mxu0
      %497 = vmatprep.mubr.bf16.mxu0 0
      %498 = vmatmul.mubr.bf16.gmra.mxu0 %v394
      %v499 = vpop.f32.mrf.mxu0
      %v500 = vadd.f32 0.0, %v499
      %v501 = vpop.f32.mrf.mxu0
      %v502 = vpop.f32.mrf.mxu0
      %v503 = vadd.f32 0.0, %v502
      %v504 = vpop.f32.mrf.mxu0
      %505 = vmatprep.mubr.bf16.mxu0 0
      %506 = vmatmul.mubr.bf16.gmra.mxu0 %v395
      %v507 = vpop.f32.mrf.mxu0
      %v508 = vadd.f32 0.0, %v507
      %v509 = vpop.f32.mrf.mxu0
      %v510 = vpop.f32.mrf.mxu0
      %v511 = vadd.f32 0.0, %v510
      %v512 = vpop.f32.mrf.mxu0
      %513 = vmatprep.mubr.bf16.mxu0 0
      %514 = vmatmul.mubr.bf16.gmra.mxu0 %v396
      %v515 = vpop.f32.mrf.mxu0
      %v516 = vadd.f32 0.0, %v515
      %v517 = vpop.f32.mrf.mxu0
      %v518 = vpop.f32.mrf.mxu0
      %v519 = vadd.f32 0.0, %v518
      %v520 = vpop.f32.mrf.mxu0
      %521 = vmatprep.mubr.bf16.mxu0 0
      %522 = vmatmul.mubr.bf16.gmra.mxu0 %v397
      %v523 = vpop.f32.mrf.mxu0
      %v524 = vadd.f32 0.0, %v523
      %v525 = vpop.f32.mrf.mxu0
      %v526 = vpop.f32.mrf.mxu0
      %v527 = vadd.f32 0.0, %v526
      %v528 = vpop.f32.mrf.mxu0
      %529 = vmatprep.mubr.bf16.mxu0 0
      %530 = vmatmul.mubr.bf16.gmra.mxu0 %v398
      %v531 = vpop.f32.mrf.mxu0
      %v532 = vadd.f32 0.0, %v531
      %v533 = vpop.f32.mrf.mxu0
      %v534 = vpop.f32.mrf.mxu0
      %v535 = vadd.f32 0.0, %v534
      %v536 = vpop.f32.mrf.mxu0
      %537 = vmatprep.mubr.bf16.mxu0 0
      %538 = vmatmul.mubr.bf16.gmra.mxu0 %v399
      %v539 = vpop.f32.mrf.mxu0
      %v540 = vadd.f32 0.0, %v539
      %v541 = vpop.f32.mrf.mxu0
      %v542 = vpop.f32.mrf.mxu0
      %v543 = vadd.f32 0.0, %v542
      %v544 = vpop.f32.mrf.mxu0
      %545 = vmatprep.mubr.bf16.mxu0 0
      %546 = vmatmul.mubr.bf16.gmra.mxu0 %v400
      %v547 = vpop.f32.mrf.mxu0
      %v548 = vadd.f32 0.0, %v547
      %v549 = vpop.f32.mrf.mxu0
      %v550 = vpop.f32.mrf.mxu0
      %v551 = vadd.f32 0.0, %v550
      %v552 = vpop.f32.mrf.mxu0
      %553 = vdwg.mxu0
      %v554 = vadd.f32 %v313, %v492
      %v555 = vadd.f32 %v314, %v495
      %v556 = vadd.f32 %v315, %v500
      %v557 = vadd.f32 %v316, %v503
      %v558 = vadd.f32 %v317, %v508
      %v559 = vadd.f32 %v318, %v511
      %v560 = vadd.f32 %v319, %v516
      %v561 = vadd.f32 %v320, %v519
      %v562 = vadd.f32 %v321, %v524
      %v563 = vadd.f32 %v322, %v527
      %v564 = vadd.f32 %v323, %v532
      %v565 = vadd.f32 %v324, %v535
      %v566 = vadd.f32 %v325, %v540
      %v567 = vadd.f32 %v326, %v543
      %v568 = vadd.f32 %v327, %v548
      %v569 = vadd.f32 %v328, %v551
      %vm570 = vcmask 64512
      %571 = vst.msk [vmem:[#allocation2] sm:$0xff] %vm570, %v554
      %572 = vst.msk [vmem:[#allocation2 + $0x8] sm:$0xff] %vm570, %v555
      %573 = vst.msk [vmem:[#allocation2 + $0x10] sm:$0xff] %vm570, %v556
      %574 = vst.msk [vmem:[#allocation2 + $0x18] sm:$0xff] %vm570, %v557
      %575 = vst.msk [vmem:[#allocation2 + $0x20] sm:$0xff] %vm570, %v558
      %576 = vst.msk [vmem:[#allocation2 + $0x28] sm:$0xff] %vm570, %v559
      %577 = vst.msk [vmem:[#allocation2 + $0x30] sm:$0xff] %vm570, %v560
      %578 = vst.msk [vmem:[#allocation2 + $0x38] sm:$0xff] %vm570, %v561
      %579 = vst.msk [vmem:[#allocation2 + $0x40] sm:$0xff] %vm570, %v562
      %580 = vst.msk [vmem:[#allocation2 + $0x48] sm:$0xff] %vm570, %v563
      %581 = vst.msk [vmem:[#allocation2 + $0x50] sm:$0xff] %vm570, %v564
      %582 = vst.msk [vmem:[#allocation2 + $0x58] sm:$0xff] %vm570, %v565
      %583 = vst.msk [vmem:[#allocation2 + $0x60] sm:$0xff] %vm570, %v566
      %584 = vst.msk [vmem:[#allocation2 + $0x68] sm:$0xff] %vm570, %v567
      %585 = vst.msk [vmem:[#allocation2 + $0x70] sm:$0xff] %vm570, %v568
      %586 = vst.msk [vmem:[#allocation2 + $0x78] sm:$0xff] %vm570, %v569
      // Predicated region
      $region41: #{graphcl_encoder_forward.2} parent=35 // pred_check
        %p587 = pneg %p292
      $region42: #{graphcl_encoder_forward.2} parent=35 // pred_check_branch
        %589 = sbr.rel (%p587) target = $region44
      $region43: #{graphcl_encoder_forward.2} parent=35 // pred_region
        %v590 = vld [vmem:[#allocation2] sm:$0xff]
        %v591 = vld [vmem:[#allocation2 + $0x8] sm:$0xff]
        %v592 = vld [vmem:[#allocation2 + $0x10] sm:$0xff]
        %v593 = vld [vmem:[#allocation2 + $0x18] sm:$0xff]
        %v594 = vld [vmem:[#allocation2 + $0x20] sm:$0xff]
        %v595 = vld [vmem:[#allocation2 + $0x28] sm:$0xff]
        %v596 = vld [vmem:[#allocation2 + $0x30] sm:$0xff]
        %v597 = vld [vmem:[#allocation2 + $0x38] sm:$0xff]
        %v598 = vld [vmem:[#allocation2 + $0x40] sm:$0xff]
        %v599 = vld [vmem:[#allocation2 + $0x48] sm:$0xff]
        %v600 = vld [vmem:[#allocation2 + $0x50] sm:$0xff]
        %v601 = vld [vmem:[#allocation2 + $0x58] sm:$0xff]
        %v602 = vld [vmem:[#allocation2 + $0x60] sm:$0xff]
        %v603 = vld [vmem:[#allocation2 + $0x68] sm:$0xff]
        %v604 = vld [vmem:[#allocation2 + $0x70] sm:$0xff]
        %v605 = vld [vmem:[#allocation2 + $0x78] sm:$0xff]
        %v606 = vpack.c.bf16 %v591, %v590
        %v607 = vpack.c.bf16 %v593, %v592
        %v608 = vpack.c.bf16 %v595, %v594
        %v609 = vpack.c.bf16 %v597, %v596
        %v610 = vpack.c.bf16 %v599, %v598
        %v611 = vpack.c.bf16 %v601, %v600
        %v612 = vpack.c.bf16 %v603, %v602
        %v613 = vpack.c.bf16 %v605, %v604
        %v614 = vld [vmem:[%s2] sm:$0xf]
        %v615 = vld [vmem:[%s3] sm:$0x1]
        %v617 = vlaneseq
        %v618 = vshrl.u32 %v617, 7
        %v619 = vsub.s32 0, %v618
        %v620 = vrot.slane %v615, %v619
        %v623 = vsel %vm570, %v606, 0
        %v626 = vsel %vm570, %v607, 0
        %v629 = vsel %vm570, %v608, 0
        %v632 = vsel %vm570, %v609, 0
        %v635 = vsel %vm570, %v610, 0
        %v638 = vsel %vm570, %v611, 0
        %v641 = vsel %vm570, %v612, 0
        %v644 = vsel %vm570, %v613, 0
        %vm646 = vcmask 1043456
        %v648 = vsel %vm646, %v614, 0
        %650 = vmatprep.subr.bf16.mxu0 0
        %651 = vmatpush1.bf16.msra.mxu0 0
        %652 = vmatprep.subr.bf16.mxu0 0
        %653 = vmatpush1.bf16.msra.mxu0 0
        %654 = vmatprep.subr.bf16.mxu0 0
        %655 = vmatpush1.bf16.msra.mxu0 0
        %656 = vmatprep.subr.bf16.mxu0 0
        %657 = vmatpush1.bf16.msra.mxu0 0
        %658 = vmatprep.subr.bf16.mxu0 0
        %659 = vmatpush1.bf16.msra.mxu0 0
        %660 = vmatprep.subr.bf16.mxu0 0
        %661 = vmatpush1.bf16.msra.mxu0 0
        %662 = vmatprep.subr.bf16.mxu0 0
        %663 = vmatpush1.bf16.msra.mxu0 0
        %664 = vmatprep.subr.bf16.mxu0 0
        %665 = vmatpush1.bf16.msra.mxu0 %v648
        %666 = vmatprep.subr.bf16.mxu0 0
        %667 = vmatpush2.bf16.msra.mxu0 0
        %668 = vmatprep.subr.bf16.mxu0 0
        %669 = vmatpush2.bf16.msra.mxu0 0
        %670 = vmatprep.subr.bf16.mxu0 0
        %671 = vmatpush2.bf16.msra.mxu0 0
        %672 = vmatprep.subr.bf16.mxu0 0
        %673 = vmatpush2.bf16.msra.mxu0 0
        %674 = vmatprep.subr.bf16.mxu0 0
        %675 = vmatpush2.bf16.msra.mxu0 0
        %676 = vmatprep.subr.bf16.mxu0 0
        %677 = vmatpush2.bf16.msra.mxu0 0
        %678 = vmatprep.subr.bf16.mxu0 0
        %679 = vmatpush2.bf16.msra.mxu0 0
        %680 = vmatprep.subr.bf16.mxu0 0
        %681 = vmatpush2.bf16.msra.mxu0 0
        %682 = vmatprep.mubr.bf16.mxu0 0
        %683 = vmatmul.mubr.bf16.gmra.mxu0 %v623
        %v684 = vpop.f32.mrf.mxu0
        %v685 = vadd.f32 %v620, %v684
        %v686 = vpop.f32.mrf.mxu0
        %v687 = vpop.f32.mrf.mxu0
        %v688 = vadd.f32 %v620, %v687
        %v689 = vpop.f32.mrf.mxu0
        %690 = vmatprep.mubr.bf16.mxu0 0
        %691 = vmatmul.mubr.bf16.gmra.mxu0 %v626
        %v692 = vpop.f32.mrf.mxu0
        %v693 = vadd.f32 %v620, %v692
        %v694 = vpop.f32.mrf.mxu0
        %v695 = vpop.f32.mrf.mxu0
        %v696 = vadd.f32 %v620, %v695
        %v697 = vpop.f32.mrf.mxu0
        %698 = vmatprep.mubr.bf16.mxu0 0
        %699 = vmatmul.mubr.bf16.gmra.mxu0 %v629
        %v700 = vpop.f32.mrf.mxu0
        %v701 = vadd.f32 %v620, %v700
        %v702 = vpop.f32.mrf.mxu0
        %v703 = vpop.f32.mrf.mxu0
        %v704 = vadd.f32 %v620, %v703
        %v705 = vpop.f32.mrf.mxu0
        %706 = vmatprep.mubr.bf16.mxu0 0
        %707 = vmatmul.mubr.bf16.gmra.mxu0 %v632
        %v708 = vpop.f32.mrf.mxu0
        %v709 = vadd.f32 %v620, %v708
        %v710 = vpop.f32.mrf.mxu0
        %v711 = vpop.f32.mrf.mxu0
        %v712 = vadd.f32 %v620, %v711
        %v713 = vpop.f32.mrf.mxu0
        %714 = vmatprep.mubr.bf16.mxu0 0
        %715 = vmatmul.mubr.bf16.gmra.mxu0 %v635
        %v716 = vpop.f32.mrf.mxu0
        %v717 = vadd.f32 %v620, %v716
        %v718 = vpop.f32.mrf.mxu0
        %v719 = vpop.f32.mrf.mxu0
        %v720 = vadd.f32 %v620, %v719
        %v721 = vpop.f32.mrf.mxu0
        %722 = vmatprep.mubr.bf16.mxu0 0
        %723 = vmatmul.mubr.bf16.gmra.mxu0 %v638
        %v724 = vpop.f32.mrf.mxu0
        %v725 = vadd.f32 %v620, %v724
        %v726 = vpop.f32.mrf.mxu0
        %v727 = vpop.f32.mrf.mxu0
        %v728 = vadd.f32 %v620, %v727
        %v729 = vpop.f32.mrf.mxu0
        %730 = vmatprep.mubr.bf16.mxu0 0
        %731 = vmatmul.mubr.bf16.gmra.mxu0 %v641
        %v732 = vpop.f32.mrf.mxu0
        %v733 = vadd.f32 %v620, %v732
        %v734 = vpop.f32.mrf.mxu0
        %v735 = vpop.f32.mrf.mxu0
        %v736 = vadd.f32 %v620, %v735
        %v737 = vpop.f32.mrf.mxu0
        %738 = vmatprep.mubr.bf16.mxu0 0
        %739 = vmatmul.mubr.bf16.gmra.mxu0 %v644
        %v740 = vpop.f32.mrf.mxu0
        %v741 = vadd.f32 %v620, %v740
        %v742 = vpop.f32.mrf.mxu0
        %v743 = vpop.f32.mrf.mxu0
        %v744 = vadd.f32 %v620, %v743
        %v745 = vpop.f32.mrf.mxu0
        %746 = vdwg.mxu0
        %v747 = vmax.f32 %v685, 0.0
        %v748 = vmax.f32 %v688, 0.0
        %v749 = vmax.f32 %v693, 0.0
        %v750 = vmax.f32 %v696, 0.0
        %v751 = vmax.f32 %v701, 0.0
        %v752 = vmax.f32 %v704, 0.0
        %v753 = vmax.f32 %v709, 0.0
        %v754 = vmax.f32 %v712, 0.0
        %v755 = vmax.f32 %v717, 0.0
        %v756 = vmax.f32 %v720, 0.0
        %v757 = vmax.f32 %v725, 0.0
        %v758 = vmax.f32 %v728, 0.0
        %v759 = vmax.f32 %v733, 0.0
        %v760 = vmax.f32 %v736, 0.0
        %v761 = vmax.f32 %v741, 0.0
        %v762 = vmax.f32 %v744, 0.0
        %v763 = vpack.c.bf16 %v748, %v747
        %v764 = vpack.c.bf16 %v750, %v749
        %v765 = vpack.c.bf16 %v752, %v751
        %v766 = vpack.c.bf16 %v754, %v753
        %v767 = vpack.c.bf16 %v756, %v755
        %v768 = vpack.c.bf16 %v758, %v757
        %v769 = vpack.c.bf16 %v760, %v759
        %v770 = vpack.c.bf16 %v762, %v761
        %v779 = vunpack.c.l.b16 %v763
        %v780 = vunpack.c.h.b16 %v763
        %v781 = vunpack.c.l.b16 %v764
        %v782 = vunpack.c.h.b16 %v764
        %v783 = vunpack.c.l.b16 %v765
        %v784 = vunpack.c.h.b16 %v765
        %v785 = vunpack.c.l.b16 %v766
        %v786 = vunpack.c.h.b16 %v766
        %v787 = vunpack.c.l.b16 %v767
        %v788 = vunpack.c.h.b16 %v767
        %v789 = vunpack.c.l.b16 %v768
        %v790 = vunpack.c.h.b16 %v768
        %v791 = vunpack.c.l.b16 %v769
        %v792 = vunpack.c.h.b16 %v769
        %v793 = vunpack.c.l.b16 %v770
        %v794 = vunpack.c.h.b16 %v770
        %v795 = vpack.c.b16 %v779, %v779
        %v796 = vpack.c.b16 %v780, %v780
        %v797 = vpack.c.b16 %v781, %v781
        %v798 = vpack.c.b16 %v782, %v782
        %v799 = vpack.c.b16 %v783, %v783
        %v800 = vpack.c.b16 %v784, %v784
        %v801 = vpack.c.b16 %v785, %v785
        %v802 = vpack.c.b16 %v786, %v786
        %v803 = vpack.c.b16 %v787, %v787
        %v804 = vpack.c.b16 %v788, %v788
        %v805 = vpack.c.b16 %v789, %v789
        %v806 = vpack.c.b16 %v790, %v790
        %v807 = vpack.c.b16 %v791, %v791
        %v808 = vpack.c.b16 %v792, %v792
        %v809 = vpack.c.b16 %v793, %v793
        %v810 = vpack.c.b16 %v794, %v794
        %827 = vst [vmem:[%s289] sm:$0xf] %v795
        %828 = vst [vmem:[%s289 + $0x4] sm:$0xf] %v796
        %829 = vst [vmem:[%s289 + $0x8] sm:$0xf] %v797
        %830 = vst [vmem:[%s289 + $0xc] sm:$0xf] %v798
        %831 = vst [vmem:[%s289 + $0x10] sm:$0xf] %v799
        %832 = vst [vmem:[%s289 + $0x14] sm:$0xf] %v800
        %833 = vst [vmem:[%s289 + $0x18] sm:$0xf] %v801
        %834 = vst [vmem:[%s289 + $0x1c] sm:$0xf] %v802
        %835 = vst [vmem:[%s289 + $0x20] sm:$0xf] %v803
        %836 = vst [vmem:[%s289 + $0x24] sm:$0xf] %v804
        %837 = vst [vmem:[%s289 + $0x28] sm:$0xf] %v805
        %838 = vst [vmem:[%s289 + $0x2c] sm:$0xf] %v806
        %839 = vst [vmem:[%s289 + $0x30] sm:$0xf] %v807
        %840 = vst [vmem:[%s289 + $0x34] sm:$0xf] %v808
        %841 = vst [vmem:[%s289 + $0x38] sm:$0xf] %v809
        %842 = vst [vmem:[%s289 + $0x3c] sm:$0xf] %v810
      $region44: #{graphcl_encoder_forward.2} parent=35 // pred_fallthru
        _
      %s843 = smul.u32 16, %s21
      %p844 = scmp.lt.s32.totalorder %s20, 2
      %s845 = scalar_select %p844, %s20, 2
      %p846 = scmp.lt.s32.totalorder %s843, 15
      %s847 = scalar_select %p846, %s843, 15
      %s848 = smul.addr %s845, 16
      %s849 = sadd.s32 %s847, %s848
      %s850 = smul.addr %s849, 4
      %s851 = scalar_lea.vmem %s4, %s850
      // Predicated region
      $region45: #{graphcl_encoder_forward.2} parent=35 // pred_check
        %p852 = pneg %p154
      $region46: #{graphcl_encoder_forward.2} parent=35 // pred_check_branch
        %854 = sbr.rel (%p852) target = $region48
      $region47: #{graphcl_encoder_forward.2} parent=35 // pred_region
        %s855 = smul.u32 16, %s21
      $region48: #{graphcl_encoder_forward.2} parent=35 // pred_fallthru
        _
    $region36: #{graphcl_encoder_forward.2} parent=5 // pred_fallthru
      _
    %p856 = scmp.le.s32.totalorder 2, %s10
    // Predicated region
    $region49: #{graphcl_encoder_forward.2} parent=5 // pred_check
      %p857 = pneg %p856
    $region50: #{graphcl_encoder_forward.2} parent=5 // pred_check_branch
      %859 = sbr.rel (%p857) target = $region52
    $region51: #{graphcl_encoder_forward.2} parent=5 // pred_region
      %s860 = ssub.s32 %s10, 2
      // Predicated region
      $region53: #{graphcl_encoder_forward.2} parent=51 // pred_check
        %p861 = pneg %p160
      $region54: #{graphcl_encoder_forward.2} parent=51 // pred_check_branch
        %863 = sbr.rel (%p861) target = $region56
      $region55: #{graphcl_encoder_forward.2} parent=51 // pred_region
        %s864 = smul.u32 16, %s24
        %p865 = scmp.lt.s32.totalorder %s23, 2
        %s866 = scalar_select %p865, %s23, 2
        %p867 = scmp.lt.s32.totalorder %s864, 15
        %s868 = scalar_select %p867, %s864, 15
        %s869 = smul.addr %s866, 16
        %s870 = sadd.s32 %s868, %s869
        %s871 = smul.addr %s870, 4
        %s872 = scalar_lea.vmem %s4, %s871
      $region56: #{graphcl_encoder_forward.2} parent=51 // pred_fallthru
        _
    $region52: #{graphcl_encoder_forward.2} parent=5 // pred_fallthru
      _
  $region6: #{graphcl_encoder_forward.2} parent=0 // loop_footer
    %s14 = sadd.s32 1, %s10
  $region7: #{graphcl_encoder_forward.2} parent=0 // loop_footer_branch
    %9 = sbr.rel target = $region3
  $region8: #{graphcl_encoder_forward.2} parent=0 // loop_exit
    _

</llo_original>
